<compile_context>
chip_gen: v7x
topology: tpu7x:2x2x1
jax: 0.10.0
libtpu: 0.0.40
codegen_flags: <defaults>
</compile_context>

<pallas_src>
import functools

import numpy as np
import jax
import jax.numpy as jnp
from jax.experimental import pallas as pl
from jax.experimental.pallas import tpu as pltpu

EPS = 1e-5                      # nn.BatchNorm2d default eps
VMEM_LIMIT = 32 * 1024 * 1024   # explicit scoped-VMEM budget (fits v5e..v7x)


# ------------------------------ Pallas kernel ------------------------------ #
def _resblock_kernel(x_ref, wb1_ref, wb2_ref, bn_ref, e_ref, et_ref, out_ref,
                     *, n, h, w, cin, cout, k, p):
    """Fully fused ResBlock forward (everything VMEM resident).

    x_ref   : (N*H, W*Cin)        f32   input rows, image-major
    wb1_ref : (k, W*Cin,  W*Cout) bf16  conv1 circulant row-bands
    wb2_ref : (k, W*Cout, W*Cout) bf16  conv2 circulant row-bands
    bn_ref  : (4, Cout)           f32   rows = gamma1, beta1, gamma2, beta2
    e_ref   : (W*Cout, Cout)      f32   column -> channel indicator
    et_ref  : (Cout, W*Cout)      f32   channel -> column indicator (E^T)
    out_ref : (N*H, W*Cout)       f32
    """
    m = n * h
    m_total = float(n * h * w)          # pixels per channel for BN statistics

    def conv(act, wb_ref, wc_in):
        """Circular-width conv as k circulant-band matmuls + row shifts."""
        acc = jnp.zeros((m, wb_ref.shape[2]), jnp.float32)
        for ky in range(k):                                  # static unroll
            dy = ky - p
            blocks = []
            for i in range(n):                               # per-image shift
                xi = act[i * h:(i + 1) * h, :]
                if dy > 0:        # shift rows up, zero-fill bottom (height pad)
                    sh = jnp.concatenate(
                        [xi[dy:, :], jnp.zeros((dy, wc_in), act.dtype)],
                        axis=0)
                elif dy < 0:      # shift rows down, zero-fill top
                    sh = jnp.concatenate(
                        [jnp.zeros((-dy, wc_in), act.dtype), xi[:h + dy, :]],
                        axis=0)
                else:
                    sh = xi
                blocks.append(sh)
            op = blocks[0] if n == 1 else jnp.concatenate(blocks, axis=0)
            acc = acc + jnp.dot(op.astype(jnp.bfloat16), wb_ref[ky],
                                preferred_element_type=jnp.float32)
        return acc

    def batchnorm(y, gamma, beta):
        """Training-mode BN folded into per-column scale/shift (2-pass var)."""
        e = e_ref[...]
        et = et_ref[...]
        mean_c = jnp.dot(jnp.sum(y, axis=0, keepdims=True), e,
                         preferred_element_type=jnp.float32) / m_total
        mean_w = jnp.dot(mean_c, et, preferred_element_type=jnp.float32)
        yc = y - mean_w
        var_c = jnp.dot(jnp.sum(yc * yc, axis=0, keepdims=True), e,
                        preferred_element_type=jnp.float32) / m_total
        scale_c = gamma * jax.lax.rsqrt(var_c + EPS)
        shift_c = beta - mean_c * scale_c
        scale_w = jnp.dot(scale_c, et, preferred_element_type=jnp.float32)
        shift_w = jnp.dot(shift_c, et, preferred_element_type=jnp.float32)
        return y * scale_w + shift_w

    x = x_ref[...]                                           # (M, W*Cin) f32
    g1, be1 = bn_ref[0:1, :], bn_ref[1:2, :]
    g2, be2 = bn_ref[2:3, :], bn_ref[3:4, :]

    y1 = conv(x, wb1_ref, w * cin)                           # conv1
    a1 = jnp.maximum(batchnorm(y1, g1, be1), 0.0)            # BN1 + ReLU
    y2 = conv(a1, wb2_ref, w * cout)                         # conv2
    out_ref[...] = batchnorm(y2, g2, be2) + x                # BN2 + residual


# ------------------------------ wrapper glue -------------------------------- #
def _circulant_bands(w_hwio, width, padding):
    """(k,k,Cin,Cout) conv weights -> (k, width*Cin, width*Cout) row bands.

    band[ky][wi*Cin+ci, wo*Cout+co] = w[ky, kx, ci, co]  with
    wi == (wo + kx - padding) mod width   (circular width wrap folded in;
    the zero height-pad is handled by the row shift inside the kernel).
    """
    k = w_hwio.shape[0]
    wo = np.arange(width)
    bands = []
    for ky in range(k):
        band = jnp.zeros((width * w_hwio.shape[2], width * w_hwio.shape[3]),
                         jnp.float32)
        for kx in range(k):
            sel = np.zeros((width, width), np.float32)
            sel[(wo + kx - padding) % width, wo] = 1.0
            band = band + jnp.kron(jnp.asarray(sel), w_hwio[ky, kx])
        bands.append(band)
    return jnp.stack(bands, axis=0)


def _channel_indicator(width, cout):
    e = np.zeros((width * cout, cout), np.float32)
    e[np.arange(width * cout), np.arange(width * cout) % cout] = 1.0
    return e


def resblock_forward(x_nchw, params, kernel_size, padding):
    n, c, h, w = x_nchw.shape
    k, p = kernel_size, padding
    assert 2 * p == k - 1, "residual add requires 'same' spatial output"
    cout = params["w1"].shape[-1]
    assert cout == c, "residual add requires in_channels == out_channels"

    # Lane-dense 2-D activation layout: (N*H, W*C), image-major rows
    # (free row-major reshape after the NCHW->NHWC transpose).
    x2 = jnp.transpose(x_nchw, (0, 2, 3, 1)).reshape(n * h, w * c)

    # Circulant row-band weights (width wrap folded in), bf16 for the MXU.
    wb1 = _circulant_bands(params["w1"], w, p).astype(jnp.bfloat16)
    wb2 = _circulant_bands(params["w2"], w, p).astype(jnp.bfloat16)
    bn = jnp.concatenate([params["g1"], params["be1"],
                          params["g2"], params["be2"]], axis=0)     # (4, Cout)
    e = jnp.asarray(_channel_indicator(w, cout))                    # (WC, C)
    et = jnp.asarray(_channel_indicator(w, cout).T)                 # (C, WC)
    # NOTE: conv biases are intentionally NOT passed — training-mode BN's mean
    # subtraction cancels any per-channel pre-BN bias exactly.

    # Fully-VMEM-resident fused path (a few hundred KB at most here).
    vmem_bytes = (x2.size + 3 * (n * h) * (w * cout)) * 4 \
        + (wb1.size + wb2.size) * 2
    assert vmem_bytes < VMEM_LIMIT // 4, "activation too large for fused path"

    kern = functools.partial(_resblock_kernel, n=n, h=h, w=w,
                             cin=c, cout=cout, k=k, p=p)
    flops = 2 * 2 * k * (n * h) * (w * c) * (w * cout)
    bytes_acc = 2 * x2.size * 4 + (wb1.size + wb2.size) * 2 + 4 * 4 * cout

    out2 = pl.pallas_call(
        kern,
        out_shape=jax.ShapeDtypeStruct((n * h, w * cout), jnp.float32),
        grid=(1,),
        in_specs=[pl.BlockSpec((n * h, w * c), lambda i: (0, 0)),
                  pl.BlockSpec(wb1.shape, lambda i: (0, 0, 0)),
                  pl.BlockSpec(wb2.shape, lambda i: (0, 0, 0)),
                  pl.BlockSpec((4, cout), lambda i: (0, 0)),
                  pl.BlockSpec((w * cout, cout), lambda i: (0, 0)),
                  pl.BlockSpec((cout, w * cout), lambda i: (0, 0))],
        out_specs=pl.BlockSpec((n * h, w * cout), lambda i: (0, 0)),
        compiler_params=pltpu.CompilerParams(
            dimension_semantics=("arbitrary",),
            vmem_limit_bytes=VMEM_LIMIT),
        cost_estimate=pl.CostEstimate(flops=flops, transcendentals=2 * cout,
                                      bytes_accessed=bytes_acc),
    )(x2, wb1, wb2, bn, e, et)

    out = out2.reshape(n, h, w, cout)
    return jnp.transpose(out, (0, 3, 1, 2))                  # NHWC -> NCHW


# ------------------------------ parameters ---------------------------------- #
def init_params(key, in_channels, out_channels, kernel_size):
    ks = jax.random.split(key, 8)
    shp_w1 = (kernel_size, kernel_size, in_channels, out_channels)   # HWIO
    shp_w2 = (kernel_size, kernel_size, out_channels, out_channels)
    return dict(
        w1=0.1 * jax.random.normal(ks[0], shp_w1, jnp.float32),
        b1=0.1 * jax.random.normal(ks[1], (1, out_channels), jnp.float32),
        g1=1.0 + 0.1 * jax.random.normal(ks[2], (1, out_channels), jnp.float32),
        be1=0.1 * jax.random.normal(ks[3], (1, out_channels), jnp.float32),
        w2=0.1 * jax.random.normal(ks[4], shp_w2, jnp.float32),
        b2=0.1 * jax.random.normal(ks[5], (1, out_channels), jnp.float32),
        g2=1.0 + 0.1 * jax.random.normal(ks[6], (1, out_channels), jnp.float32),
        be2=0.1 * jax.random.normal(ks[7], (1, out_channels), jnp.float32),
    )


# --------------------------- pure-JAX reference ----------------------------- #
def circular_pad_nhwc(x, p):
    """CircularPadding: zero-pad all sides, then circularly wrap the width."""
    if p == 0:
        return x
    x = jnp.pad(x, ((0, 0), (p, p), (p, p), (0, 0)))
    x = x.at[:, :, 0:p, :].set(x[:, :, -2 * p:-p, :])
    x = x.at[:, :, -p:, :].set(x[:, :, p:2 * p, :])
    return x


def ref_forward(x_nchw, params, kernel_size, padding):
    x = jnp.transpose(x_nchw, (0, 2, 3, 1))

    def conv(xp, w_hwio, b):
        y = jax.lax.conv_general_dilated(
            xp, w_hwio, (1, 1), "VALID",
            dimension_numbers=("NHWC", "HWIO", "NHWC"))
        return y + b.reshape(1, 1, 1, -1)

    def bn(y, g, be):
        mu = y.mean((0, 1, 2), keepdims=True)
        v = ((y - mu) ** 2).mean((0, 1, 2), keepdims=True)
        return (y - mu) / jnp.sqrt(v + EPS) * g.reshape(1, 1, 1, -1) \
            + be.reshape(1, 1, 1, -1)

    out = jnp.maximum(
        bn(conv(circular_pad_nhwc(x, padding), params["w1"], params["b1"]),
           params["g1"], params["be1"]), 0.0)
    out = bn(conv(circular_pad_nhwc(out, padding), params["w2"], params["b2"]),
             params["g2"], params["be2"])
    out = out + x
    return jnp.transpose(out, (0, 3, 1, 2))


if __name__ == "__main__":
    N, C, H, W = 2, 4, 16, 16
    K, PAD = 3, 1

    key = jax.random.PRNGKey(0)
    kx, kp = jax.random.split(key)
    x = jax.random.normal(kx, (N, C, H, W), jnp.float32)
    params = init_params(kp, C, C, K)

    fwd = jax.jit(functools.partial(resblock_forward,
                                    kernel_size=K, padding=PAD))
    out = jax.block_until_ready(fwd(x, params))
    ref = jax.block_until_ready(ref_forward(x, params, K, PAD))

    assert out.shape == (N, C, H, W), out.shape
    err = float(jnp.max(jnp.abs(out - ref)))
    # bf16 MXU inputs (f32 accumulation) -> loosened tolerance vs f32 reference.
    assert jnp.allclose(out, ref, atol=5e-2, rtol=5e-2), err

    print("KERNEL_OK")
</pallas_src>

<mosaic_0001>
module attributes {stable_mosaic.version = 11 : i64} {
  func.func @_resblock_kernel(%arg0: i32, %arg1: memref<32x64xf32, #tpu.memory_space<vmem>>, %arg2: memref<3x64x64xbf16, #tpu.memory_space<vmem>>, %arg3: memref<3x64x64xbf16, #tpu.memory_space<vmem>>, %arg4: memref<4x4xf32, #tpu.memory_space<vmem>>, %arg5: memref<64x4xf32, #tpu.memory_space<vmem>>, %arg6: memref<4x64xf32, #tpu.memory_space<vmem>>, %arg7: memref<32x64xf32, #tpu.memory_space<vmem>>) attributes {dimension_semantics = [#tpu.dimension_semantics<arbitrary>], iteration_bounds = array<i64: 1>, scalar_prefetch = 0 : i64, scratch_operands = 0 : i64, tpu.core_type = #tpu.core_type<tc>, window_params = [{pipeline_mode = #tpu.pipeline_mode<synchronous>, transform_indices = @transform_0, window_bounds = array<i64: 32, 64>}, {pipeline_mode = #tpu.pipeline_mode<synchronous>, transform_indices = @transform_1, window_bounds = array<i64: 3, 64, 64>}, {pipeline_mode = #tpu.pipeline_mode<synchronous>, transform_indices = @transform_2, window_bounds = array<i64: 3, 64, 64>}, {pipeline_mode = #tpu.pipeline_mode<synchronous>, transform_indices = @transform_3, window_bounds = array<i64: 4, 4>}, {pipeline_mode = #tpu.pipeline_mode<synchronous>, transform_indices = @transform_4, window_bounds = array<i64: 64, 4>}, {pipeline_mode = #tpu.pipeline_mode<synchronous>, transform_indices = @transform_5, window_bounds = array<i64: 4, 64>}, {pipeline_mode = #tpu.pipeline_mode<synchronous>, transform_indices = @transform_6, window_bounds = array<i64: 32, 64>}]} {
    %c0 = arith.constant 0 : index
    %c0_0 = arith.constant 0 : index
    %0 = vector.load %arg1[%c0, %c0_0] : memref<32x64xf32, #tpu.memory_space<vmem>>, vector<32x64xf32>
    %c0_1 = arith.constant 0 : index
    %c0_2 = arith.constant 0 : index
    %1 = vector.load %arg4[%c0_1, %c0_2] : memref<4x4xf32, #tpu.memory_space<vmem>>, vector<1x4xf32>
    %c1 = arith.constant 1 : index
    %c0_3 = arith.constant 0 : index
    %2 = vector.load %arg4[%c1, %c0_3] : memref<4x4xf32, #tpu.memory_space<vmem>>, vector<1x4xf32>
    %c2 = arith.constant 2 : index
    %c0_4 = arith.constant 0 : index
    %3 = vector.load %arg4[%c2, %c0_4] : memref<4x4xf32, #tpu.memory_space<vmem>>, vector<1x4xf32>
    %c3 = arith.constant 3 : index
    %c0_5 = arith.constant 0 : index
    %4 = vector.load %arg4[%c3, %c0_5] : memref<4x4xf32, #tpu.memory_space<vmem>>, vector<1x4xf32>
    %cst = arith.constant 0.000000e+00 : f32
    %5 = vector.broadcast %cst : f32 to vector<32x64xf32>
    %6 = vector.extract_strided_slice %0 {offsets = [0, 0], sizes = [16, 64], strides = [1, 1]} : vector<32x64xf32> to vector<16x64xf32>
    %cst_6 = arith.constant 0.000000e+00 : f32
    %7 = vector.broadcast %cst_6 : f32 to vector<1x64xf32>
    %8 = vector.extract_strided_slice %6 {offsets = [0, 0], sizes = [15, 64], strides = [1, 1]} : vector<16x64xf32> to vector<15x64xf32>
    %9 = tpu.concatenate %7, %8 in 0 : vector<1x64xf32>, vector<15x64xf32> -> vector<16x64xf32>
    %10 = vector.extract_strided_slice %0 {offsets = [16, 0], sizes = [16, 64], strides = [1, 1]} : vector<32x64xf32> to vector<16x64xf32>
    %cst_7 = arith.constant 0.000000e+00 : f32
    %11 = vector.broadcast %cst_7 : f32 to vector<1x64xf32>
    %12 = vector.extract_strided_slice %10 {offsets = [0, 0], sizes = [15, 64], strides = [1, 1]} : vector<16x64xf32> to vector<15x64xf32>
    %13 = tpu.concatenate %11, %12 in 0 : vector<1x64xf32>, vector<15x64xf32> -> vector<16x64xf32>
    %14 = tpu.concatenate %9, %13 in 0 : vector<16x64xf32>, vector<16x64xf32> -> vector<32x64xf32>
    %15 = arith.truncf %14 : vector<32x64xf32> to vector<32x64xbf16>
    %c0_8 = arith.constant 0 : index
    %c0_9 = arith.constant 0 : index
    %c0_10 = arith.constant 0 : index
    %16 = vector.load %arg2[%c0_8, %c0_9, %c0_10] : memref<3x64x64xbf16, #tpu.memory_space<vmem>>, vector<1x64x64xbf16>
    %17 = vector.shape_cast %16 : vector<1x64x64xbf16> to vector<64x64xbf16>
    %cst_11 = arith.constant dense<0.000000e+00> : vector<32x64xf32>
    %18 = tpu.matmul %15, %17, %cst_11 {dimension_numbers = #tpu.dot_dimension_numbers<[1], [0], [0], [1], [0, 0, 1, 1], [], []>} : vector<32x64xbf16>, vector<64x64xbf16>, vector<32x64xf32> -> vector<32x64xf32>
    %19 = arith.addf %5, %18 : vector<32x64xf32>
    %20 = vector.extract_strided_slice %0 {offsets = [0, 0], sizes = [16, 64], strides = [1, 1]} : vector<32x64xf32> to vector<16x64xf32>
    %21 = vector.extract_strided_slice %0 {offsets = [16, 0], sizes = [16, 64], strides = [1, 1]} : vector<32x64xf32> to vector<16x64xf32>
    %22 = tpu.concatenate %20, %21 in 0 : vector<16x64xf32>, vector<16x64xf32> -> vector<32x64xf32>
    %23 = arith.truncf %22 : vector<32x64xf32> to vector<32x64xbf16>
    %c1_12 = arith.constant 1 : index
    %c0_13 = arith.constant 0 : index
    %c0_14 = arith.constant 0 : index
    %24 = vector.load %arg2[%c1_12, %c0_13, %c0_14] : memref<3x64x64xbf16, #tpu.memory_space<vmem>>, vector<1x64x64xbf16>
    %25 = vector.shape_cast %24 : vector<1x64x64xbf16> to vector<64x64xbf16>
    %cst_15 = arith.constant dense<0.000000e+00> : vector<32x64xf32>
    %26 = tpu.matmul %23, %25, %cst_15 {dimension_numbers = #tpu.dot_dimension_numbers<[1], [0], [0], [1], [0, 0, 1, 1], [], []>} : vector<32x64xbf16>, vector<64x64xbf16>, vector<32x64xf32> -> vector<32x64xf32>
    %27 = arith.addf %19, %26 : vector<32x64xf32>
    %28 = vector.extract_strided_slice %0 {offsets = [0, 0], sizes = [16, 64], strides = [1, 1]} : vector<32x64xf32> to vector<16x64xf32>
    %29 = vector.extract_strided_slice %28 {offsets = [1, 0], sizes = [15, 64], strides = [1, 1]} : vector<16x64xf32> to vector<15x64xf32>
    %cst_16 = arith.constant 0.000000e+00 : f32
    %30 = vector.broadcast %cst_16 : f32 to vector<1x64xf32>
    %31 = tpu.concatenate %29, %30 in 0 : vector<15x64xf32>, vector<1x64xf32> -> vector<16x64xf32>
    %32 = vector.extract_strided_slice %0 {offsets = [16, 0], sizes = [16, 64], strides = [1, 1]} : vector<32x64xf32> to vector<16x64xf32>
    %33 = vector.extract_strided_slice %32 {offsets = [1, 0], sizes = [15, 64], strides = [1, 1]} : vector<16x64xf32> to vector<15x64xf32>
    %cst_17 = arith.constant 0.000000e+00 : f32
    %34 = vector.broadcast %cst_17 : f32 to vector<1x64xf32>
    %35 = tpu.concatenate %33, %34 in 0 : vector<15x64xf32>, vector<1x64xf32> -> vector<16x64xf32>
    %36 = tpu.concatenate %31, %35 in 0 : vector<16x64xf32>, vector<16x64xf32> -> vector<32x64xf32>
    %37 = arith.truncf %36 : vector<32x64xf32> to vector<32x64xbf16>
    %c2_18 = arith.constant 2 : index
    %c0_19 = arith.constant 0 : index
    %c0_20 = arith.constant 0 : index
    %38 = vector.load %arg2[%c2_18, %c0_19, %c0_20] : memref<3x64x64xbf16, #tpu.memory_space<vmem>>, vector<1x64x64xbf16>
    %39 = vector.shape_cast %38 : vector<1x64x64xbf16> to vector<64x64xbf16>
    %cst_21 = arith.constant dense<0.000000e+00> : vector<32x64xf32>
    %40 = tpu.matmul %37, %39, %cst_21 {dimension_numbers = #tpu.dot_dimension_numbers<[1], [0], [0], [1], [0, 0, 1, 1], [], []>} : vector<32x64xbf16>, vector<64x64xbf16>, vector<32x64xf32> -> vector<32x64xf32>
    %41 = arith.addf %27, %40 : vector<32x64xf32>
    %c0_22 = arith.constant 0 : index
    %c0_23 = arith.constant 0 : index
    %42 = vector.load %arg5[%c0_22, %c0_23] : memref<64x4xf32, #tpu.memory_space<vmem>>, vector<64x4xf32>
    %c0_24 = arith.constant 0 : index
    %c0_25 = arith.constant 0 : index
    %43 = vector.load %arg6[%c0_24, %c0_25] : memref<4x64xf32, #tpu.memory_space<vmem>>, vector<4x64xf32>
    %cst_26 = arith.constant dense<0.000000e+00> : vector<64xf32>
    %44 = vector.multi_reduction <add>, %41, %cst_26 [0] : vector<32x64xf32> to vector<64xf32>
    %45 = vector.shape_cast %44 : vector<64xf32> to vector<1x64xf32>
    %cst_27 = arith.constant dense<0.000000e+00> : vector<1x4xf32>
    %46 = tpu.matmul %45, %42, %cst_27 {dimension_numbers = #tpu.dot_dimension_numbers<[1], [0], [0], [1], [0, 0, 1, 1], [], []>} : vector<1x64xf32>, vector<64x4xf32>, vector<1x4xf32> -> vector<1x4xf32>
    %cst_28 = arith.constant 5.120000e+02 : f32
    %47 = vector.broadcast %cst_28 : f32 to vector<1x4xf32>
    %48 = arith.divf %46, %47 : vector<1x4xf32>
    %cst_29 = arith.constant dense<0.000000e+00> : vector<1x64xf32>
    %49 = tpu.matmul %48, %43, %cst_29 {dimension_numbers = #tpu.dot_dimension_numbers<[1], [0], [0], [1], [0, 0, 1, 1], [], []>} : vector<1x4xf32>, vector<4x64xf32>, vector<1x64xf32> -> vector<1x64xf32>
    %50 = vector.broadcast %49 : vector<1x64xf32> to vector<32x64xf32>
    %51 = arith.subf %41, %50 : vector<32x64xf32>
    %52 = arith.mulf %51, %51 : vector<32x64xf32>
    %cst_30 = arith.constant dense<0.000000e+00> : vector<64xf32>
    %53 = vector.multi_reduction <add>, %52, %cst_30 [0] : vector<32x64xf32> to vector<64xf32>
    %54 = vector.shape_cast %53 : vector<64xf32> to vector<1x64xf32>
    %cst_31 = arith.constant dense<0.000000e+00> : vector<1x4xf32>
    %55 = tpu.matmul %54, %42, %cst_31 {dimension_numbers = #tpu.dot_dimension_numbers<[1], [0], [0], [1], [0, 0, 1, 1], [], []>} : vector<1x64xf32>, vector<64x4xf32>, vector<1x4xf32> -> vector<1x4xf32>
    %cst_32 = arith.constant 5.120000e+02 : f32
    %56 = vector.broadcast %cst_32 : f32 to vector<1x4xf32>
    %57 = arith.divf %55, %56 : vector<1x4xf32>
    %cst_33 = arith.constant 9.99999974E-6 : f32
    %58 = vector.broadcast %cst_33 : f32 to vector<1x4xf32>
    %59 = arith.addf %57, %58 : vector<1x4xf32>
    %60 = math.rsqrt %59 : vector<1x4xf32>
    %61 = arith.mulf %1, %60 : vector<1x4xf32>
    %62 = arith.mulf %48, %61 : vector<1x4xf32>
    %63 = arith.subf %2, %62 : vector<1x4xf32>
    %cst_34 = arith.constant dense<0.000000e+00> : vector<1x64xf32>
    %64 = tpu.matmul %61, %43, %cst_34 {dimension_numbers = #tpu.dot_dimension_numbers<[1], [0], [0], [1], [0, 0, 1, 1], [], []>} : vector<1x4xf32>, vector<4x64xf32>, vector<1x64xf32> -> vector<1x64xf32>
    %cst_35 = arith.constant dense<0.000000e+00> : vector<1x64xf32>
    %65 = tpu.matmul %63, %43, %cst_35 {dimension_numbers = #tpu.dot_dimension_numbers<[1], [0], [0], [1], [0, 0, 1, 1], [], []>} : vector<1x4xf32>, vector<4x64xf32>, vector<1x64xf32> -> vector<1x64xf32>
    %66 = vector.broadcast %64 : vector<1x64xf32> to vector<32x64xf32>
    %67 = arith.mulf %41, %66 : vector<32x64xf32>
    %68 = vector.broadcast %65 : vector<1x64xf32> to vector<32x64xf32>
    %69 = arith.addf %67, %68 : vector<32x64xf32>
    %cst_36 = arith.constant 0.000000e+00 : f32
    %70 = vector.broadcast %cst_36 : f32 to vector<32x64xf32>
    %71 = arith.maximumf %69, %70 : vector<32x64xf32>
    %cst_37 = arith.constant 0.000000e+00 : f32
    %72 = vector.broadcast %cst_37 : f32 to vector<32x64xf32>
    %73 = vector.extract_strided_slice %71 {offsets = [0, 0], sizes = [16, 64], strides = [1, 1]} : vector<32x64xf32> to vector<16x64xf32>
    %cst_38 = arith.constant 0.000000e+00 : f32
    %74 = vector.broadcast %cst_38 : f32 to vector<1x64xf32>
    %75 = vector.extract_strided_slice %73 {offsets = [0, 0], sizes = [15, 64], strides = [1, 1]} : vector<16x64xf32> to vector<15x64xf32>
    %76 = tpu.concatenate %74, %75 in 0 : vector<1x64xf32>, vector<15x64xf32> -> vector<16x64xf32>
    %77 = vector.extract_strided_slice %71 {offsets = [16, 0], sizes = [16, 64], strides = [1, 1]} : vector<32x64xf32> to vector<16x64xf32>
    %cst_39 = arith.constant 0.000000e+00 : f32
    %78 = vector.broadcast %cst_39 : f32 to vector<1x64xf32>
    %79 = vector.extract_strided_slice %77 {offsets = [0, 0], sizes = [15, 64], strides = [1, 1]} : vector<16x64xf32> to vector<15x64xf32>
    %80 = tpu.concatenate %78, %79 in 0 : vector<1x64xf32>, vector<15x64xf32> -> vector<16x64xf32>
    %81 = tpu.concatenate %76, %80 in 0 : vector<16x64xf32>, vector<16x64xf32> -> vector<32x64xf32>
    %82 = arith.truncf %81 : vector<32x64xf32> to vector<32x64xbf16>
    %c0_40 = arith.constant 0 : index
    %c0_41 = arith.constant 0 : index
    %c0_42 = arith.constant 0 : index
    %83 = vector.load %arg3[%c0_40, %c0_41, %c0_42] : memref<3x64x64xbf16, #tpu.memory_space<vmem>>, vector<1x64x64xbf16>
    %84 = vector.shape_cast %83 : vector<1x64x64xbf16> to vector<64x64xbf16>
    %cst_43 = arith.constant dense<0.000000e+00> : vector<32x64xf32>
    %85 = tpu.matmul %82, %84, %cst_43 {dimension_numbers = #tpu.dot_dimension_numbers<[1], [0], [0], [1], [0, 0, 1, 1], [], []>} : vector<32x64xbf16>, vector<64x64xbf16>, vector<32x64xf32> -> vector<32x64xf32>
    %86 = arith.addf %72, %85 : vector<32x64xf32>
    %87 = vector.extract_strided_slice %71 {offsets = [0, 0], sizes = [16, 64], strides = [1, 1]} : vector<32x64xf32> to vector<16x64xf32>
    %88 = vector.extract_strided_slice %71 {offsets = [16, 0], sizes = [16, 64], strides = [1, 1]} : vector<32x64xf32> to vector<16x64xf32>
    %89 = tpu.concatenate %87, %88 in 0 : vector<16x64xf32>, vector<16x64xf32> -> vector<32x64xf32>
    %90 = arith.truncf %89 : vector<32x64xf32> to vector<32x64xbf16>
    %c1_44 = arith.constant 1 : index
    %c0_45 = arith.constant 0 : index
    %c0_46 = arith.constant 0 : index
    %91 = vector.load %arg3[%c1_44, %c0_45, %c0_46] : memref<3x64x64xbf16, #tpu.memory_space<vmem>>, vector<1x64x64xbf16>
    %92 = vector.shape_cast %91 : vector<1x64x64xbf16> to vector<64x64xbf16>
    %cst_47 = arith.constant dense<0.000000e+00> : vector<32x64xf32>
    %93 = tpu.matmul %90, %92, %cst_47 {dimension_numbers = #tpu.dot_dimension_numbers<[1], [0], [0], [1], [0, 0, 1, 1], [], []>} : vector<32x64xbf16>, vector<64x64xbf16>, vector<32x64xf32> -> vector<32x64xf32>
    %94 = arith.addf %86, %93 : vector<32x64xf32>
    %95 = vector.extract_strided_slice %71 {offsets = [0, 0], sizes = [16, 64], strides = [1, 1]} : vector<32x64xf32> to vector<16x64xf32>
    %96 = vector.extract_strided_slice %95 {offsets = [1, 0], sizes = [15, 64], strides = [1, 1]} : vector<16x64xf32> to vector<15x64xf32>
    %cst_48 = arith.constant 0.000000e+00 : f32
    %97 = vector.broadcast %cst_48 : f32 to vector<1x64xf32>
    %98 = tpu.concatenate %96, %97 in 0 : vector<15x64xf32>, vector<1x64xf32> -> vector<16x64xf32>
    %99 = vector.extract_strided_slice %71 {offsets = [16, 0], sizes = [16, 64], strides = [1, 1]} : vector<32x64xf32> to vector<16x64xf32>
    %100 = vector.extract_strided_slice %99 {offsets = [1, 0], sizes = [15, 64], strides = [1, 1]} : vector<16x64xf32> to vector<15x64xf32>
    %cst_49 = arith.constant 0.000000e+00 : f32
    %101 = vector.broadcast %cst_49 : f32 to vector<1x64xf32>
    %102 = tpu.concatenate %100, %101 in 0 : vector<15x64xf32>, vector<1x64xf32> -> vector<16x64xf32>
    %103 = tpu.concatenate %98, %102 in 0 : vector<16x64xf32>, vector<16x64xf32> -> vector<32x64xf32>
    %104 = arith.truncf %103 : vector<32x64xf32> to vector<32x64xbf16>
    %c2_50 = arith.constant 2 : index
    %c0_51 = arith.constant 0 : index
    %c0_52 = arith.constant 0 : index
    %105 = vector.load %arg3[%c2_50, %c0_51, %c0_52] : memref<3x64x64xbf16, #tpu.memory_space<vmem>>, vector<1x64x64xbf16>
    %106 = vector.shape_cast %105 : vector<1x64x64xbf16> to vector<64x64xbf16>
    %cst_53 = arith.constant dense<0.000000e+00> : vector<32x64xf32>
    %107 = tpu.matmul %104, %106, %cst_53 {dimension_numbers = #tpu.dot_dimension_numbers<[1], [0], [0], [1], [0, 0, 1, 1], [], []>} : vector<32x64xbf16>, vector<64x64xbf16>, vector<32x64xf32> -> vector<32x64xf32>
    %108 = arith.addf %94, %107 : vector<32x64xf32>
    %c0_54 = arith.constant 0 : index
    %c0_55 = arith.constant 0 : index
    %109 = vector.load %arg5[%c0_54, %c0_55] : memref<64x4xf32, #tpu.memory_space<vmem>>, vector<64x4xf32>
    %c0_56 = arith.constant 0 : index
    %c0_57 = arith.constant 0 : index
    %110 = vector.load %arg6[%c0_56, %c0_57] : memref<4x64xf32, #tpu.memory_space<vmem>>, vector<4x64xf32>
    %cst_58 = arith.constant dense<0.000000e+00> : vector<64xf32>
    %111 = vector.multi_reduction <add>, %108, %cst_58 [0] : vector<32x64xf32> to vector<64xf32>
    %112 = vector.shape_cast %111 : vector<64xf32> to vector<1x64xf32>
    %cst_59 = arith.constant dense<0.000000e+00> : vector<1x4xf32>
    %113 = tpu.matmul %112, %109, %cst_59 {dimension_numbers = #tpu.dot_dimension_numbers<[1], [0], [0], [1], [0, 0, 1, 1], [], []>} : vector<1x64xf32>, vector<64x4xf32>, vector<1x4xf32> -> vector<1x4xf32>
    %cst_60 = arith.constant 5.120000e+02 : f32
    %114 = vector.broadcast %cst_60 : f32 to vector<1x4xf32>
    %115 = arith.divf %113, %114 : vector<1x4xf32>
    %cst_61 = arith.constant dense<0.000000e+00> : vector<1x64xf32>
    %116 = tpu.matmul %115, %110, %cst_61 {dimension_numbers = #tpu.dot_dimension_numbers<[1], [0], [0], [1], [0, 0, 1, 1], [], []>} : vector<1x4xf32>, vector<4x64xf32>, vector<1x64xf32> -> vector<1x64xf32>
    %117 = vector.broadcast %116 : vector<1x64xf32> to vector<32x64xf32>
    %118 = arith.subf %108, %117 : vector<32x64xf32>
    %119 = arith.mulf %118, %118 : vector<32x64xf32>
    %cst_62 = arith.constant dense<0.000000e+00> : vector<64xf32>
    %120 = vector.multi_reduction <add>, %119, %cst_62 [0] : vector<32x64xf32> to vector<64xf32>
    %121 = vector.shape_cast %120 : vector<64xf32> to vector<1x64xf32>
    %cst_63 = arith.constant dense<0.000000e+00> : vector<1x4xf32>
    %122 = tpu.matmul %121, %109, %cst_63 {dimension_numbers = #tpu.dot_dimension_numbers<[1], [0], [0], [1], [0, 0, 1, 1], [], []>} : vector<1x64xf32>, vector<64x4xf32>, vector<1x4xf32> -> vector<1x4xf32>
    %cst_64 = arith.constant 5.120000e+02 : f32
    %123 = vector.broadcast %cst_64 : f32 to vector<1x4xf32>
    %124 = arith.divf %122, %123 : vector<1x4xf32>
    %cst_65 = arith.constant 9.99999974E-6 : f32
    %125 = vector.broadcast %cst_65 : f32 to vector<1x4xf32>
    %126 = arith.addf %124, %125 : vector<1x4xf32>
    %127 = math.rsqrt %126 : vector<1x4xf32>
    %128 = arith.mulf %3, %127 : vector<1x4xf32>
    %129 = arith.mulf %115, %128 : vector<1x4xf32>
    %130 = arith.subf %4, %129 : vector<1x4xf32>
    %cst_66 = arith.constant dense<0.000000e+00> : vector<1x64xf32>
    %131 = tpu.matmul %128, %110, %cst_66 {dimension_numbers = #tpu.dot_dimension_numbers<[1], [0], [0], [1], [0, 0, 1, 1], [], []>} : vector<1x4xf32>, vector<4x64xf32>, vector<1x64xf32> -> vector<1x64xf32>
    %cst_67 = arith.constant dense<0.000000e+00> : vector<1x64xf32>
    %132 = tpu.matmul %130, %110, %cst_67 {dimension_numbers = #tpu.dot_dimension_numbers<[1], [0], [0], [1], [0, 0, 1, 1], [], []>} : vector<1x4xf32>, vector<4x64xf32>, vector<1x64xf32> -> vector<1x64xf32>
    %133 = vector.broadcast %131 : vector<1x64xf32> to vector<32x64xf32>
    %134 = arith.mulf %108, %133 : vector<32x64xf32>
    %135 = vector.broadcast %132 : vector<1x64xf32> to vector<32x64xf32>
    %136 = arith.addf %134, %135 : vector<32x64xf32>
    %137 = arith.addf %136, %0 : vector<32x64xf32>
    %c0_68 = arith.constant 0 : index
    %c0_69 = arith.constant 0 : index
    %138 = vector.load %arg7[%c0_68, %c0_69] : memref<32x64xf32, #tpu.memory_space<vmem>>, vector<32x64xf32>
    tpu.vector_store %arg7[%c0_68, %c0_69], %137 {strides = array<i32>} : memref<32x64xf32, #tpu.memory_space<vmem>>, vector<32x64xf32>,
    return
  }
  func.func @transform_0(%arg0: i32) -> (i32, i32) {
    %c0_i32 = arith.constant 0 : i32
    %c0_i32_0 = arith.constant 0 : i32
    %c0_i32_1 = arith.constant 0 : i32
    return %c0_i32, %c0_i32_0 : i32, i32
  }
  func.func @transform_1(%arg0: i32) -> (i32, i32, i32) {
    %c0_i32 = arith.constant 0 : i32
    %c0_i32_0 = arith.constant 0 : i32
    %c0_i32_1 = arith.constant 0 : i32
    %c0_i32_2 = arith.constant 0 : i32
    return %c0_i32, %c0_i32_0, %c0_i32_1 : i32, i32, i32
  }
  func.func @transform_2(%arg0: i32) -> (i32, i32, i32) {
    %c0_i32 = arith.constant 0 : i32
    %c0_i32_0 = arith.constant 0 : i32
    %c0_i32_1 = arith.constant 0 : i32
    %c0_i32_2 = arith.constant 0 : i32
    return %c0_i32, %c0_i32_0, %c0_i32_1 : i32, i32, i32
  }
  func.func @transform_3(%arg0: i32) -> (i32, i32) {
    %c0_i32 = arith.constant 0 : i32
    %c0_i32_0 = arith.constant 0 : i32
    %c0_i32_1 = arith.constant 0 : i32
    return %c0_i32, %c0_i32_0 : i32, i32
  }
  func.func @transform_4(%arg0: i32) -> (i32, i32) {
    %c0_i32 = arith.constant 0 : i32
    %c0_i32_0 = arith.constant 0 : i32
    %c0_i32_1 = arith.constant 0 : i32
    return %c0_i32, %c0_i32_0 : i32, i32
  }
  func.func @transform_5(%arg0: i32) -> (i32, i32) {
    %c0_i32 = arith.constant 0 : i32
    %c0_i32_0 = arith.constant 0 : i32
    %c0_i32_1 = arith.constant 0 : i32
    return %c0_i32, %c0_i32_0 : i32, i32
  }
  func.func @transform_6(%arg0: i32) -> (i32, i32) {
    %c0_i32 = arith.constant 0 : i32
    %c0_i32_0 = arith.constant 0 : i32
    %c0_i32_1 = arith.constant 0 : i32
    return %c0_i32, %c0_i32_0 : i32, i32
  }
}

</mosaic_0001>

<llo_original>
// kernel: resblock_forward.1
$region0: #{resblock_forward.1}
  #allocation0 [shape = 'u32[]', space=smem, size = 0x4, offset = 0x4, fixed_abs, tag = 'smem constant byte address 0x4 - core index']
  #allocation1 [shape = 'u32[144,128]{1,0:T(1,128)}', space=vmem, size = 0x12000, scoped, tag = 'internal scratch']
  %s0 = inlined_call_operand.vmem [shape: f32[32,64], index: 0, kind: input, shape index: {}]
  %s1 = inlined_call_operand.vmem [shape: bf16[3,64,64], index: 1, kind: input, shape index: {}]
  %s2 = inlined_call_operand.vmem [shape: bf16[3,64,64], index: 2, kind: input, shape index: {}]
  %s3 = inlined_call_operand.vmem [shape: f32[4,4], index: 3, kind: input, shape index: {}]
  %s4 = inlined_call_operand.vmem [shape: f32[64,4], index: 4, kind: input, shape index: {}]
  %s5 = inlined_call_operand.vmem [shape: f32[4,64], index: 5, kind: input, shape index: {}]
  %s6 = inlined_call_operand.vmem [shape: f32[32,64], index: 6, kind: output, shape index: {}]
  %s7 = sld [smem:[#allocation0]]
  $region34: #{resblock_forward.1} parent=0
    _
  %s9 = ssub.s32 1, %s7
  %s10 = scalar_select 0, %s9, %s7
  // Predicated region
  $region2: #{resblock_forward.1} parent=0 // pred_check
    _
  $region3: #{resblock_forward.1} parent=0 // pred_check_branch
    %12 = sbr.rel (0) target = $region5
  $region4: #{resblock_forward.1} parent=0 // pred_region
    _
  $region5: #{resblock_forward.1} parent=0 // pred_fallthru
    _
  // Predicated region
  $region6: #{resblock_forward.1} parent=0 // pred_check
    _
  $region7: #{resblock_forward.1} parent=0 // pred_check_branch
    %14 = sbr.rel (0) target = $region9
  $region8: #{resblock_forward.1} parent=0 // pred_region
    _
  $region9: #{resblock_forward.1} parent=0 // pred_fallthru
    _
  // Predicated region
  $region10: #{resblock_forward.1} parent=0 // pred_check
    _
  $region11: #{resblock_forward.1} parent=0 // pred_check_branch
    %16 = sbr.rel (0) target = $region13
  $region12: #{resblock_forward.1} parent=0 // pred_region
    _
  $region13: #{resblock_forward.1} parent=0 // pred_fallthru
    _
  // Predicated region
  $region14: #{resblock_forward.1} parent=0 // pred_check
    _
  $region15: #{resblock_forward.1} parent=0 // pred_check_branch
    %18 = sbr.rel (0) target = $region17
  $region16: #{resblock_forward.1} parent=0 // pred_region
    _
  $region17: #{resblock_forward.1} parent=0 // pred_fallthru
    _
  // Predicated region
  $region18: #{resblock_forward.1} parent=0 // pred_check
    _
  $region19: #{resblock_forward.1} parent=0 // pred_check_branch
    %20 = sbr.rel (0) target = $region21
  $region20: #{resblock_forward.1} parent=0 // pred_region
    _
  $region21: #{resblock_forward.1} parent=0 // pred_fallthru
    _
  // Predicated region
  $region22: #{resblock_forward.1} parent=0 // pred_check
    _
  $region23: #{resblock_forward.1} parent=0 // pred_check_branch
    %22 = sbr.rel (0) target = $region25
  $region24: #{resblock_forward.1} parent=0 // pred_region
    _
  $region25: #{resblock_forward.1} parent=0 // pred_fallthru
    _
  %v24 = vld [vmem:[%s0] sm:$0xff]
  %v25 = vld [vmem:[%s0 + $0x8] sm:$0xff]
  %v26 = vld [vmem:[%s0 + $0x10] sm:$0xff]
  %v27 = vld [vmem:[%s0 + $0x18] sm:$0xff]
  %v28 = vld [vmem:[%s3] sm:$0x1]
  %v29 = vld [vmem:[%s3 + $0x1] sm:$0x1]
  %v30 = vld [vmem:[%s3 + $0x2] sm:$0x1]
  %v31 = vld [vmem:[%s3 + $0x3] sm:$0x1]
  %vm34 = vcmask 1040384
  %v35 = vrot.slane %v24, 7
  %v36 = vrot.slane %v25, 7
  %v37 = vsel %vm34, %v35, %v36
  %v40 = vsel %vm34, 0.0, %v35
  %v43 = vrot.slane %v26, 7
  %v44 = vrot.slane %v27, 7
  %v45 = vsel %vm34, %v43, %v44
  %v48 = vsel %vm34, 0.0, %v43
  %v49 = vpack.c.bf16 %v37, %v40
  %v50 = vpack.c.bf16 %v45, %v48
  %v51 = vld [vmem:[%s1] sm:$0xf]
  %v52 = vld [vmem:[%s1 + $0x4] sm:$0xf]
  %v53 = vld [vmem:[%s1 + $0x8] sm:$0xf]
  %v54 = vld [vmem:[%s1 + $0xc] sm:$0xf]
  %v55 = vld [vmem:[%s1 + $0x10] sm:$0xf]
  %v56 = vld [vmem:[%s1 + $0x14] sm:$0xf]
  %v57 = vld [vmem:[%s1 + $0x18] sm:$0xf]
  %v58 = vld [vmem:[%s1 + $0x1c] sm:$0xf]
  %v59 = vpack.c.bf16 %v25, %v24
  %v60 = vpack.c.bf16 %v27, %v26
  %s61 = scalar_lea.vmem %s1, 32
  %v62 = vld [vmem:[%s61] sm:$0xf]
  %v63 = vld [vmem:[%s61 + $0x4] sm:$0xf]
  %v64 = vld [vmem:[%s61 + $0x8] sm:$0xf]
  %v65 = vld [vmem:[%s61 + $0xc] sm:$0xf]
  %v66 = vld [vmem:[%s61 + $0x10] sm:$0xf]
  %v67 = vld [vmem:[%s61 + $0x14] sm:$0xf]
  %v68 = vld [vmem:[%s61 + $0x18] sm:$0xf]
  %v69 = vld [vmem:[%s61 + $0x1c] sm:$0xf]
  %v78 = vunpack.c.l.b16 %v62
  %v79 = vunpack.c.l.b16 %v63
  %v80 = vunpack.c.l.b16 %v64
  %v81 = vunpack.c.l.b16 %v65
  %v82 = vunpack.c.l.b16 %v66
  %v83 = vunpack.c.l.b16 %v67
  %v84 = vunpack.c.l.b16 %v68
  %v85 = vunpack.c.l.b16 %v69
  %v86 = vpack.c.b16 %v79, %v78
  %v87 = vpack.c.b16 %v81, %v80
  %v88 = vpack.c.b16 %v83, %v82
  %v89 = vpack.c.b16 %v85, %v84
  %vm94 = vcmask 523264
  %v96 = vsel %vm94, %v59, 0
  %v99 = vsel %vm94, %v60, 0
  %101 = vmatprep.subr.bf16.mxu0 0
  %102 = vmatpush1.bf16.msra.mxu0 %v86
  %103 = vmatprep.subr.bf16.mxu0 0
  %104 = vmatpush1.bf16.msra.mxu0 %v87
  %105 = vmatprep.subr.bf16.mxu0 0
  %106 = vmatpush1.bf16.msra.mxu0 %v88
  %107 = vmatprep.subr.bf16.mxu0 0
  %108 = vmatpush1.bf16.msra.mxu0 %v89
  %109 = vmatprep.subr.bf16.mxu0 0
  %110 = vmatpush1.bf16.msra.mxu0 0
  %111 = vmatprep.subr.bf16.mxu0 0
  %112 = vmatpush1.bf16.msra.mxu0 0
  %113 = vmatprep.subr.bf16.mxu0 0
  %114 = vmatpush1.bf16.msra.mxu0 0
  %115 = vmatprep.subr.bf16.mxu0 0
  %116 = vmatpush1.bf16.msra.mxu0 0
  %117 = vmatprep.subr.bf16.mxu0 0
  %118 = vmatpush1.bf16.msra.mxu0 0
  %119 = vmatprep.subr.bf16.mxu0 0
  %120 = vmatpush1.bf16.msra.mxu0 0
  %121 = vmatprep.subr.bf16.mxu0 0
  %122 = vmatpush1.bf16.msra.mxu0 0
  %123 = vmatprep.subr.bf16.mxu0 0
  %124 = vmatpush1.bf16.msra.mxu0 0
  %125 = vmatprep.subr.bf16.mxu0 0
  %126 = vmatpush1.bf16.msra.mxu0 0
  %127 = vmatprep.subr.bf16.mxu0 0
  %128 = vmatpush1.bf16.msra.mxu0 0
  %129 = vmatprep.subr.bf16.mxu0 0
  %130 = vmatpush1.bf16.msra.mxu0 0
  %131 = vmatprep.subr.bf16.mxu0 0
  %132 = vmatpush1.bf16.msra.mxu0 0
  %133 = vmatprep.mubr.bf16.mxu0 0
  %134 = vmatmul.mubr.bf16.gmra.mrb[0].mxu0 %v96
  %v135 = vpop.f32.mrb[0].mxu0
  %v136 = vadd.f32 0.0, %v135
  %v137 = vpop.f32.mrb[0].mxu0
  %v138 = vpop.f32.mrb[0].mxu0
  %v139 = vadd.f32 0.0, %v138
  %v140 = vpop.f32.mrb[0].mxu0
  %141 = vmatprep.mubr.bf16.mxu0 0
  %142 = vmatmul.mubr.bf16.gmra.mrb[0].mxu0 %v99
  %v143 = vpop.f32.mrb[0].mxu0
  %v144 = vadd.f32 0.0, %v143
  %v145 = vpop.f32.mrb[0].mxu0
  %v146 = vpop.f32.mrb[0].mxu0
  %v147 = vadd.f32 0.0, %v146
  %v148 = vpop.f32.mrb[0].mxu0
  %149 = vdwg.mxu0
  %v158 = vunpack.c.l.b16 %v51
  %v159 = vunpack.c.l.b16 %v52
  %v160 = vunpack.c.l.b16 %v53
  %v161 = vunpack.c.l.b16 %v54
  %v162 = vunpack.c.l.b16 %v55
  %v163 = vunpack.c.l.b16 %v56
  %v164 = vunpack.c.l.b16 %v57
  %v165 = vunpack.c.l.b16 %v58
  %v166 = vpack.c.b16 %v159, %v158
  %v167 = vpack.c.b16 %v161, %v160
  %v168 = vpack.c.b16 %v163, %v162
  %v169 = vpack.c.b16 %v165, %v164
  %v175 = vsel %vm94, %v49, 0
  %v178 = vsel %vm94, %v50, 0
  %180 = vmatprep.subr.bf16.mxu0 0
  %181 = vmatpush1.bf16.msra.mxu0 %v166
  %182 = vmatprep.subr.bf16.mxu0 0
  %183 = vmatpush1.bf16.msra.mxu0 %v167
  %184 = vmatprep.subr.bf16.mxu0 0
  %185 = vmatpush1.bf16.msra.mxu0 %v168
  %186 = vmatprep.subr.bf16.mxu0 0
  %187 = vmatpush1.bf16.msra.mxu0 %v169
  %188 = vmatprep.subr.bf16.mxu0 0
  %189 = vmatpush1.bf16.msra.mxu0 0
  %190 = vmatprep.subr.bf16.mxu0 0
  %191 = vmatpush1.bf16.msra.mxu0 0
  %192 = vmatprep.subr.bf16.mxu0 0
  %193 = vmatpush1.bf16.msra.mxu0 0
  %194 = vmatprep.subr.bf16.mxu0 0
  %195 = vmatpush1.bf16.msra.mxu0 0
  %196 = vmatprep.subr.bf16.mxu0 0
  %197 = vmatpush1.bf16.msra.mxu0 0
  %198 = vmatprep.subr.bf16.mxu0 0
  %199 = vmatpush1.bf16.msra.mxu0 0
  %200 = vmatprep.subr.bf16.mxu0 0
  %201 = vmatpush1.bf16.msra.mxu0 0
  %202 = vmatprep.subr.bf16.mxu0 0
  %203 = vmatpush1.bf16.msra.mxu0 0
  %204 = vmatprep.subr.bf16.mxu0 0
  %205 = vmatpush1.bf16.msra.mxu0 0
  %206 = vmatprep.subr.bf16.mxu0 0
  %207 = vmatpush1.bf16.msra.mxu0 0
  %208 = vmatprep.subr.bf16.mxu0 0
  %209 = vmatpush1.bf16.msra.mxu0 0
  %210 = vmatprep.subr.bf16.mxu0 0
  %211 = vmatpush1.bf16.msra.mxu0 0
  %212 = vmatprep.mubr.bf16.mxu0 0
  %213 = vmatmul.mubr.bf16.gmra.mrb[0].mxu0 %v175
  %v214 = vpop.f32.mrb[0].mxu0
  %v215 = vadd.f32 %v136, %v214
  %v216 = vpop.f32.mrb[0].mxu0
  %v217 = vpop.f32.mrb[0].mxu0
  %v218 = vadd.f32 %v139, %v217
  %v219 = vpop.f32.mrb[0].mxu0
  %220 = vmatprep.mubr.bf16.mxu0 0
  %221 = vmatmul.mubr.bf16.gmra.mrb[0].mxu0 %v178
  %v222 = vpop.f32.mrb[0].mxu0
  %v223 = vadd.f32 %v144, %v222
  %v224 = vpop.f32.mrb[0].mxu0
  %v225 = vpop.f32.mrb[0].mxu0
  %v226 = vadd.f32 %v147, %v225
  %v227 = vpop.f32.mrb[0].mxu0
  %228 = vdwg.mxu0
  %vm229 = vcmask 1046528
  %v230 = vrot.slane %v24, 1
  %v231 = vrot.slane %v25, 1
  %v232 = vsel %vm229, %v230, %v231
  %v235 = vsel %vm229, %v231, 0.0
  %v236 = vrot.slane %v26, 1
  %v237 = vrot.slane %v27, 1
  %v238 = vsel %vm229, %v236, %v237
  %v241 = vsel %vm229, %v237, 0.0
  %v242 = vpack.c.bf16 %v235, %v232
  %v243 = vpack.c.bf16 %v241, %v238
  %s244 = scalar_lea.vmem %s1, 64
  %v245 = vld [vmem:[%s244] sm:$0xf]
  %v246 = vld [vmem:[%s244 + $0x4] sm:$0xf]
  %v247 = vld [vmem:[%s244 + $0x8] sm:$0xf]
  %v248 = vld [vmem:[%s244 + $0xc] sm:$0xf]
  %v249 = vld [vmem:[%s244 + $0x10] sm:$0xf]
  %v250 = vld [vmem:[%s244 + $0x14] sm:$0xf]
  %v251 = vld [vmem:[%s244 + $0x18] sm:$0xf]
  %v252 = vld [vmem:[%s244 + $0x1c] sm:$0xf]
  %v261 = vunpack.c.l.b16 %v245
  %v262 = vunpack.c.l.b16 %v246
  %v263 = vunpack.c.l.b16 %v247
  %v264 = vunpack.c.l.b16 %v248
  %v265 = vunpack.c.l.b16 %v249
  %v266 = vunpack.c.l.b16 %v250
  %v267 = vunpack.c.l.b16 %v251
  %v268 = vunpack.c.l.b16 %v252
  %v269 = vpack.c.b16 %v262, %v261
  %v270 = vpack.c.b16 %v264, %v263
  %v271 = vpack.c.b16 %v266, %v265
  %v272 = vpack.c.b16 %v268, %v267
  %v278 = vsel %vm94, %v242, 0
  %v281 = vsel %vm94, %v243, 0
  %283 = vmatprep.subr.bf16.mxu0 0
  %284 = vmatpush1.bf16.msra.mxu0 %v269
  %285 = vmatprep.subr.bf16.mxu0 0
  %286 = vmatpush1.bf16.msra.mxu0 %v270
  %287 = vmatprep.subr.bf16.mxu0 0
  %288 = vmatpush1.bf16.msra.mxu0 %v271
  %289 = vmatprep.subr.bf16.mxu0 0
  %290 = vmatpush1.bf16.msra.mxu0 %v272
  %291 = vmatprep.subr.bf16.mxu0 0
  %292 = vmatpush1.bf16.msra.mxu0 0
  %293 = vmatprep.subr.bf16.mxu0 0
  %294 = vmatpush1.bf16.msra.mxu0 0
  %295 = vmatprep.subr.bf16.mxu0 0
  %296 = vmatpush1.bf16.msra.mxu0 0
  %297 = vmatprep.subr.bf16.mxu0 0
  %298 = vmatpush1.bf16.msra.mxu0 0
  %299 = vmatprep.subr.bf16.mxu0 0
  %300 = vmatpush1.bf16.msra.mxu0 0
  %301 = vmatprep.subr.bf16.mxu0 0
  %302 = vmatpush1.bf16.msra.mxu0 0
  %303 = vmatprep.subr.bf16.mxu0 0
  %304 = vmatpush1.bf16.msra.mxu0 0
  %305 = vmatprep.subr.bf16.mxu0 0
  %306 = vmatpush1.bf16.msra.mxu0 0
  %307 = vmatprep.subr.bf16.mxu0 0
  %308 = vmatpush1.bf16.msra.mxu0 0
  %309 = vmatprep.subr.bf16.mxu0 0
  %310 = vmatpush1.bf16.msra.mxu0 0
  %311 = vmatprep.subr.bf16.mxu0 0
  %312 = vmatpush1.bf16.msra.mxu0 0
  %313 = vmatprep.subr.bf16.mxu0 0
  %314 = vmatpush1.bf16.msra.mxu0 0
  %315 = vmatprep.mubr.bf16.mxu0 0
  %316 = vmatmul.mubr.bf16.gmra.mrb[0].mxu0 %v278
  %v317 = vpop.f32.mrb[0].mxu0
  %v318 = vadd.f32 0.0, %v317
  %v319 = vpop.f32.mrb[0].mxu0
  %v320 = vpop.f32.mrb[0].mxu0
  %v321 = vadd.f32 0.0, %v320
  %v322 = vpop.f32.mrb[0].mxu0
  %323 = vmatprep.mubr.bf16.mxu0 0
  %324 = vmatmul.mubr.bf16.gmra.mrb[0].mxu0 %v281
  %v325 = vpop.f32.mrb[0].mxu0
  %v326 = vadd.f32 0.0, %v325
  %v327 = vpop.f32.mrb[0].mxu0
  %v328 = vpop.f32.mrb[0].mxu0
  %v329 = vadd.f32 0.0, %v328
  %v330 = vpop.f32.mrb[0].mxu0
  %331 = vdwg.mxu0
  %v332 = vadd.f32 %v215, %v318
  %v333 = vadd.f32 %v218, %v321
  %v334 = vadd.f32 %v223, %v326
  %v335 = vadd.f32 %v226, %v329
  %v336 = vld [vmem:[%s4] sm:$0xff]
  %v337 = vld [vmem:[%s4 + $0x8] sm:$0xff]
  %v338 = vld [vmem:[%s4 + $0x10] sm:$0xff]
  %v339 = vld [vmem:[%s4 + $0x18] sm:$0xff]
  %v340 = vld [vmem:[%s4 + $0x20] sm:$0xff]
  %v341 = vld [vmem:[%s4 + $0x28] sm:$0xff]
  %v342 = vld [vmem:[%s4 + $0x30] sm:$0xff]
  %v343 = vld [vmem:[%s4 + $0x38] sm:$0xff]
  %v344 = vld [vmem:[%s5] sm:$0xf]
  %v345 = vsel %vm94, %v332, 0.0
  %v346 = vsel %vm94, %v333, 0.0
  %v347 = vadd.f32 %v345, %v346
  %v348 = vsel %vm94, %v334, 0.0
  %v349 = vadd.f32 %v347, %v348
  %v350 = vsel %vm94, %v335, 0.0
  %v351 = vadd.f32 %v349, %v350
  %v352 = vrot.slane %v351, 4
  %v353 = vadd.f32 %v351, %v352
  %v354 = vrot.slane %v353, 2
  %v355 = vadd.f32 %v353, %v354
  %v356 = vrot.slane %v355, 1
  %v357 = vadd.f32 %v355, %v356
  %v359 = vsel %vm94, %v357, 0
  %361 = vmatprep.subr.mxu0 0.0
  %362 = vmatpush1.msra.mxu0 %v336
  %363 = vmatprep.subr.mxu0 0.0
  %364 = vmatpush1.msra.mxu0 %v337
  %365 = vmatprep.subr.mxu0 0.0
  %366 = vmatpush1.msra.mxu0 %v338
  %367 = vmatprep.subr.mxu0 0.0
  %368 = vmatpush1.msra.mxu0 %v339
  %369 = vmatprep.subr.mxu0 0.0
  %370 = vmatpush1.msra.mxu0 %v340
  %371 = vmatprep.subr.mxu0 0.0
  %372 = vmatpush1.msra.mxu0 %v341
  %373 = vmatprep.subr.mxu0 0.0
  %374 = vmatpush1.msra.mxu0 %v342
  %375 = vmatprep.subr.mxu0 0.0
  %376 = vmatpush1.msra.mxu0 %v343
  %377 = vmatprep.subr.mxu0 0.0
  %378 = vmatpush1.msra.mxu0 0.0
  %379 = vmatprep.subr.mxu0 0.0
  %380 = vmatpush1.msra.mxu0 0.0
  %381 = vmatprep.subr.mxu0 0.0
  %382 = vmatpush1.msra.mxu0 0.0
  %383 = vmatprep.subr.mxu0 0.0
  %384 = vmatpush1.msra.mxu0 0.0
  %385 = vmatprep.subr.mxu0 0.0
  %386 = vmatpush1.msra.mxu0 0.0
  %387 = vmatprep.subr.mxu0 0.0
  %388 = vmatpush1.msra.mxu0 0.0
  %389 = vmatprep.subr.mxu0 0.0
  %390 = vmatpush1.msra.mxu0 0.0
  %391 = vmatprep.subr.mxu0 0.0
  %392 = vmatpush1.msra.mxu0 0.0
  %393 = vmatprep.subr.mxu0 0.0
  %394 = vmatpush1.msra.mxu0 0.0
  %395 = vmatprep.subr.mxu0 0.0
  %396 = vmatpush1.msra.mxu0 0.0
  %397 = vmatprep.subr.mxu0 0.0
  %398 = vmatpush1.msra.mxu0 0.0
  %399 = vmatprep.subr.mxu0 0.0
  %400 = vmatpush1.msra.mxu0 0.0
  %401 = vmatprep.subr.mxu0 0.0
  %402 = vmatpush1.msra.mxu0 0.0
  %403 = vmatprep.subr.mxu0 0.0
  %404 = vmatpush1.msra.mxu0 0.0
  %405 = vmatprep.subr.mxu0 0.0
  %406 = vmatpush1.msra.mxu0 0.0
  %407 = vmatprep.subr.mxu0 0.0
  %408 = vmatpush1.msra.mxu0 0.0
  %409 = vmatprep.subr.mxu0 0.0
  %410 = vmatpush1.msra.mxu0 0.0
  %411 = vmatprep.subr.mxu0 0.0
  %412 = vmatpush1.msra.mxu0 0.0
  %413 = vmatprep.subr.mxu0 0.0
  %414 = vmatpush1.msra.mxu0 0.0
  %415 = vmatprep.subr.mxu0 0.0
  %416 = vmatpush1.msra.mxu0 0.0
  %417 = vmatprep.subr.mxu0 0.0
  %418 = vmatpush1.msra.mxu0 0.0
  %419 = vmatprep.subr.mxu0 0.0
  %420 = vmatpush1.msra.mxu0 0.0
  %421 = vmatprep.subr.mxu0 0.0
  %422 = vmatpush1.msra.mxu0 0.0
  %423 = vmatprep.subr.mxu0 0.0
  %424 = vmatpush1.msra.mxu0 0.0
  %425 = vmatprep.mubr.f32.mxu0 0.0
  %426 = vmatmul.mubr.f32.gmra.mrb[0].mxu0 %v359
  %v427 = vpop.f32.mrb[0].mxu0
  %v428 = vadd.f32 0.0, %v427
  %v429 = vpop.f32.mrb[0].mxu0
  %430 = vdwg.mxu0
  %v431 = vrcp.pop 512.0
  %v432 = vmul.f32 %v428, %v431
  %vm433 = vcmask 31744
  %v435 = vsel %vm433, %v432, 0
  %vm437 = vcmask 1043456
  %v439 = vsel %vm437, %v344, 0
  %441 = vmatprep.subr.mxu0 0.0
  %442 = vmatpush1.msra.mxu0 %v439
  %443 = vmatprep.subr.mxu0 0.0
  %444 = vmatpush1.msra.mxu0 0.0
  %445 = vmatprep.subr.mxu0 0.0
  %446 = vmatpush1.msra.mxu0 0.0
  %447 = vmatprep.subr.mxu0 0.0
  %448 = vmatpush1.msra.mxu0 0.0
  %449 = vmatprep.subr.mxu0 0.0
  %450 = vmatpush1.msra.mxu0 0.0
  %451 = vmatprep.subr.mxu0 0.0
  %452 = vmatpush1.msra.mxu0 0.0
  %453 = vmatprep.subr.mxu0 0.0
  %454 = vmatpush1.msra.mxu0 0.0
  %455 = vmatprep.subr.mxu0 0.0
  %456 = vmatpush1.msra.mxu0 0.0
  %457 = vmatprep.subr.mxu0 0.0
  %458 = vmatpush1.msra.mxu0 0.0
  %459 = vmatprep.subr.mxu0 0.0
  %460 = vmatpush1.msra.mxu0 0.0
  %461 = vmatprep.subr.mxu0 0.0
  %462 = vmatpush1.msra.mxu0 0.0
  %463 = vmatprep.subr.mxu0 0.0
  %464 = vmatpush1.msra.mxu0 0.0
  %465 = vmatprep.subr.mxu0 0.0
  %466 = vmatpush1.msra.mxu0 0.0
  %467 = vmatprep.subr.mxu0 0.0
  %468 = vmatpush1.msra.mxu0 0.0
  %469 = vmatprep.subr.mxu0 0.0
  %470 = vmatpush1.msra.mxu0 0.0
  %471 = vmatprep.subr.mxu0 0.0
  %472 = vmatpush1.msra.mxu0 0.0
  %473 = vmatprep.subr.mxu0 0.0
  %474 = vmatpush1.msra.mxu0 0.0
  %475 = vmatprep.subr.mxu0 0.0
  %476 = vmatpush1.msra.mxu0 0.0
  %477 = vmatprep.subr.mxu0 0.0
  %478 = vmatpush1.msra.mxu0 0.0
  %479 = vmatprep.subr.mxu0 0.0
  %480 = vmatpush1.msra.mxu0 0.0
  %481 = vmatprep.subr.mxu0 0.0
  %482 = vmatpush1.msra.mxu0 0.0
  %483 = vmatprep.subr.mxu0 0.0
  %484 = vmatpush1.msra.mxu0 0.0
  %485 = vmatprep.subr.mxu0 0.0
  %486 = vmatpush1.msra.mxu0 0.0
  %487 = vmatprep.subr.mxu0 0.0
  %488 = vmatpush1.msra.mxu0 0.0
  %489 = vmatprep.subr.mxu0 0.0
  %490 = vmatpush1.msra.mxu0 0.0
  %491 = vmatprep.subr.mxu0 0.0
  %492 = vmatpush1.msra.mxu0 0.0
  %493 = vmatprep.subr.mxu0 0.0
  %494 = vmatpush1.msra.mxu0 0.0
  %495 = vmatprep.subr.mxu0 0.0
  %496 = vmatpush1.msra.mxu0 0.0
  %497 = vmatprep.subr.mxu0 0.0
  %498 = vmatpush1.msra.mxu0 0.0
  %499 = vmatprep.subr.mxu0 0.0
  %500 = vmatpush1.msra.mxu0 0.0
  %501 = vmatprep.subr.mxu0 0.0
  %502 = vmatpush1.msra.mxu0 0.0
  %503 = vmatprep.subr.mxu0 0.0
  %504 = vmatpush1.msra.mxu0 0.0
  %505 = vmatprep.mubr.f32.mxu0 0.0
  %506 = vmatmul.mubr.f32.gmra.mrb[0].mxu0 %v435
  %v507 = vpop.f32.mrb[0].mxu0
  %v508 = vadd.f32 0.0, %v507
  %v509 = vpop.f32.mrb[0].mxu0
  %510 = vdwg.mxu0
  %v511 = vlaneseq
  %v512 = vshrl.u32 %v511, 7
  %v513 = vsub.s32 0, %v512
  %v514 = vrot.slane %v508, %v513
  %v515 = vsub.f32 %v332, %v514
  %v516 = vsub.f32 %v333, %v514
  %v517 = vsub.f32 %v334, %v514
  %v518 = vsub.f32 %v335, %v514
  %v519 = vmul.f32 %v515, %v515
  %v520 = vmul.f32 %v516, %v516
  %v521 = vmul.f32 %v517, %v517
  %v522 = vmul.f32 %v518, %v518
  %v523 = vsel %vm94, %v519, 0.0
  %v524 = vsel %vm94, %v520, 0.0
  %v525 = vadd.f32 %v523, %v524
  %v526 = vsel %vm94, %v521, 0.0
  %v527 = vadd.f32 %v525, %v526
  %v528 = vsel %vm94, %v522, 0.0
  %v529 = vadd.f32 %v527, %v528
  %v530 = vrot.slane %v529, 4
  %v531 = vadd.f32 %v529, %v530
  %v532 = vrot.slane %v531, 2
  %v533 = vadd.f32 %v531, %v532
  %v534 = vrot.slane %v533, 1
  %v535 = vadd.f32 %v533, %v534
  %v537 = vsel %vm94, %v535, 0
  %539 = vmatprep.subr.mxu0 0.0
  %540 = vmatpush1.msra.mxu0 %v336
  %541 = vmatprep.subr.mxu0 0.0
  %542 = vmatpush1.msra.mxu0 %v337
  %543 = vmatprep.subr.mxu0 0.0
  %544 = vmatpush1.msra.mxu0 %v338
  %545 = vmatprep.subr.mxu0 0.0
  %546 = vmatpush1.msra.mxu0 %v339
  %547 = vmatprep.subr.mxu0 0.0
  %548 = vmatpush1.msra.mxu0 %v340
  %549 = vmatprep.subr.mxu0 0.0
  %550 = vmatpush1.msra.mxu0 %v341
  %551 = vmatprep.subr.mxu0 0.0
  %552 = vmatpush1.msra.mxu0 %v342
  %553 = vmatprep.subr.mxu0 0.0
  %554 = vmatpush1.msra.mxu0 %v343
  %555 = vmatprep.subr.mxu0 0.0
  %556 = vmatpush1.msra.mxu0 0.0
  %557 = vmatprep.subr.mxu0 0.0
  %558 = vmatpush1.msra.mxu0 0.0
  %559 = vmatprep.subr.mxu0 0.0
  %560 = vmatpush1.msra.mxu0 0.0
  %561 = vmatprep.subr.mxu0 0.0
  %562 = vmatpush1.msra.mxu0 0.0
  %563 = vmatprep.subr.mxu0 0.0
  %564 = vmatpush1.msra.mxu0 0.0
  %565 = vmatprep.subr.mxu0 0.0
  %566 = vmatpush1.msra.mxu0 0.0
  %567 = vmatprep.subr.mxu0 0.0
  %568 = vmatpush1.msra.mxu0 0.0
  %569 = vmatprep.subr.mxu0 0.0
  %570 = vmatpush1.msra.mxu0 0.0
  %571 = vmatprep.subr.mxu0 0.0
  %572 = vmatpush1.msra.mxu0 0.0
  %573 = vmatprep.subr.mxu0 0.0
  %574 = vmatpush1.msra.mxu0 0.0
  %575 = vmatprep.subr.mxu0 0.0
  %576 = vmatpush1.msra.mxu0 0.0
  %577 = vmatprep.subr.mxu0 0.0
  %578 = vmatpush1.msra.mxu0 0.0
  %579 = vmatprep.subr.mxu0 0.0
  %580 = vmatpush1.msra.mxu0 0.0
  %581 = vmatprep.subr.mxu0 0.0
  %582 = vmatpush1.msra.mxu0 0.0
  %583 = vmatprep.subr.mxu0 0.0
  %584 = vmatpush1.msra.mxu0 0.0
  %585 = vmatprep.subr.mxu0 0.0
  %586 = vmatpush1.msra.mxu0 0.0
  %587 = vmatprep.subr.mxu0 0.0
  %588 = vmatpush1.msra.mxu0 0.0
  %589 = vmatprep.subr.mxu0 0.0
  %590 = vmatpush1.msra.mxu0 0.0
  %591 = vmatprep.subr.mxu0 0.0
  %592 = vmatpush1.msra.mxu0 0.0
  %593 = vmatprep.subr.mxu0 0.0
  %594 = vmatpush1.msra.mxu0 0.0
  %595 = vmatprep.subr.mxu0 0.0
  %596 = vmatpush1.msra.mxu0 0.0
  %597 = vmatprep.subr.mxu0 0.0
  %598 = vmatpush1.msra.mxu0 0.0
  %599 = vmatprep.subr.mxu0 0.0
  %600 = vmatpush1.msra.mxu0 0.0
  %601 = vmatprep.subr.mxu0 0.0
  %602 = vmatpush1.msra.mxu0 0.0
  %603 = vmatprep.mubr.f32.mxu0 0.0
  %604 = vmatmul.mubr.f32.gmra.mrb[0].mxu0 %v537
  %v605 = vpop.f32.mrb[0].mxu0
  %v606 = vadd.f32 0.0, %v605
  %v607 = vpop.f32.mrb[0].mxu0
  %608 = vdwg.mxu0
  %v609 = vmul.f32 %v606, %v431
  %v610 = vadd.f32 %v609, 1e-05
  %v611 = vrsqrt.pop %v610
  %v612 = vmul.f32 %v28, %v611
  %v613 = vmul.f32 %v432, %v612
  %v614 = vsub.f32 %v29, %v613
  %v616 = vsel %vm433, %v612, 0
  %618 = vmatprep.subr.mxu0 0.0
  %619 = vmatpush1.msra.mxu0 %v439
  %620 = vmatprep.subr.mxu0 0.0
  %621 = vmatpush1.msra.mxu0 0.0
  %622 = vmatprep.subr.mxu0 0.0
  %623 = vmatpush1.msra.mxu0 0.0
  %624 = vmatprep.subr.mxu0 0.0
  %625 = vmatpush1.msra.mxu0 0.0
  %626 = vmatprep.subr.mxu0 0.0
  %627 = vmatpush1.msra.mxu0 0.0
  %628 = vmatprep.subr.mxu0 0.0
  %629 = vmatpush1.msra.mxu0 0.0
  %630 = vmatprep.subr.mxu0 0.0
  %631 = vmatpush1.msra.mxu0 0.0
  %632 = vmatprep.subr.mxu0 0.0
  %633 = vmatpush1.msra.mxu0 0.0
  %634 = vmatprep.subr.mxu0 0.0
  %635 = vmatpush1.msra.mxu0 0.0
  %636 = vmatprep.subr.mxu0 0.0
  %637 = vmatpush1.msra.mxu0 0.0
  %638 = vmatprep.subr.mxu0 0.0
  %639 = vmatpush1.msra.mxu0 0.0
  %640 = vmatprep.subr.mxu0 0.0
  %641 = vmatpush1.msra.mxu0 0.0
  %642 = vmatprep.subr.mxu0 0.0
  %643 = vmatpush1.msra.mxu0 0.0
  %644 = vmatprep.subr.mxu0 0.0
  %645 = vmatpush1.msra.mxu0 0.0
  %646 = vmatprep.subr.mxu0 0.0
  %647 = vmatpush1.msra.mxu0 0.0
  %648 = vmatprep.subr.mxu0 0.0
  %649 = vmatpush1.msra.mxu0 0.0
  %650 = vmatprep.subr.mxu0 0.0
  %651 = vmatpush1.msra.mxu0 0.0
  %652 = vmatprep.subr.mxu0 0.0
  %653 = vmatpush1.msra.mxu0 0.0
  %654 = vmatprep.subr.mxu0 0.0
  %655 = vmatpush1.msra.mxu0 0.0
  %656 = vmatprep.subr.mxu0 0.0
  %657 = vmatpush1.msra.mxu0 0.0
  %658 = vmatprep.subr.mxu0 0.0
  %659 = vmatpush1.msra.mxu0 0.0
  %660 = vmatprep.subr.mxu0 0.0
  %661 = vmatpush1.msra.mxu0 0.0
  %662 = vmatprep.subr.mxu0 0.0
  %663 = vmatpush1.msra.mxu0 0.0
  %664 = vmatprep.subr.mxu0 0.0
  %665 = vmatpush1.msra.mxu0 0.0
  %666 = vmatprep.subr.mxu0 0.0
  %667 = vmatpush1.msra.mxu0 0.0
  %668 = vmatprep.subr.mxu0 0.0
  %669 = vmatpush1.msra.mxu0 0.0
  %670 = vmatprep.subr.mxu0 0.0
  %671 = vmatpush1.msra.mxu0 0.0
  %672 = vmatprep.subr.mxu0 0.0
  %673 = vmatpush1.msra.mxu0 0.0
  %674 = vmatprep.subr.mxu0 0.0
  %675 = vmatpush1.msra.mxu0 0.0
  %676 = vmatprep.subr.mxu0 0.0
  %677 = vmatpush1.msra.mxu0 0.0
  %678 = vmatprep.subr.mxu0 0.0
  %679 = vmatpush1.msra.mxu0 0.0
  %680 = vmatprep.subr.mxu0 0.0
  %681 = vmatpush1.msra.mxu0 0.0
  %682 = vmatprep.mubr.f32.mxu0 0.0
  %683 = vmatmul.mubr.f32.gmra.mrb[0].mxu0 %v616
  %v684 = vpop.f32.mrb[0].mxu0
  %v685 = vadd.f32 0.0, %v684
  %v686 = vpop.f32.mrb[0].mxu0
  %687 = vdwg.mxu0
  %v689 = vsel %vm433, %v614, 0
  %691 = vmatprep.subr.mxu0 0.0
  %692 = vmatpush1.msra.mxu0 %v439
  %693 = vmatprep.subr.mxu0 0.0
  %694 = vmatpush1.msra.mxu0 0.0
  %695 = vmatprep.subr.mxu0 0.0
  %696 = vmatpush1.msra.mxu0 0.0
  %697 = vmatprep.subr.mxu0 0.0
  %698 = vmatpush1.msra.mxu0 0.0
  %699 = vmatprep.subr.mxu0 0.0
  %700 = vmatpush1.msra.mxu0 0.0
  %701 = vmatprep.subr.mxu0 0.0
  %702 = vmatpush1.msra.mxu0 0.0
  %703 = vmatprep.subr.mxu0 0.0
  %704 = vmatpush1.msra.mxu0 0.0
  %705 = vmatprep.subr.mxu0 0.0
  %706 = vmatpush1.msra.mxu0 0.0
  %707 = vmatprep.subr.mxu0 0.0
  %708 = vmatpush1.msra.mxu0 0.0
  %709 = vmatprep.subr.mxu0 0.0
  %710 = vmatpush1.msra.mxu0 0.0
  %711 = vmatprep.subr.mxu0 0.0
  %712 = vmatpush1.msra.mxu0 0.0
  %713 = vmatprep.subr.mxu0 0.0
  %714 = vmatpush1.msra.mxu0 0.0
  %715 = vmatprep.subr.mxu0 0.0
  %716 = vmatpush1.msra.mxu0 0.0
  %717 = vmatprep.subr.mxu0 0.0
  %718 = vmatpush1.msra.mxu0 0.0
  %719 = vmatprep.subr.mxu0 0.0
  %720 = vmatpush1.msra.mxu0 0.0
  %721 = vmatprep.subr.mxu0 0.0
  %722 = vmatpush1.msra.mxu0 0.0
  %723 = vmatprep.subr.mxu0 0.0
  %724 = vmatpush1.msra.mxu0 0.0
  %725 = vmatprep.subr.mxu0 0.0
  %726 = vmatpush1.msra.mxu0 0.0
  %727 = vmatprep.subr.mxu0 0.0
  %728 = vmatpush1.msra.mxu0 0.0
  %729 = vmatprep.subr.mxu0 0.0
  %730 = vmatpush1.msra.mxu0 0.0
  %731 = vmatprep.subr.mxu0 0.0
  %732 = vmatpush1.msra.mxu0 0.0
  %733 = vmatprep.subr.mxu0 0.0
  %734 = vmatpush1.msra.mxu0 0.0
  %735 = vmatprep.subr.mxu0 0.0
  %736 = vmatpush1.msra.mxu0 0.0
  %737 = vmatprep.subr.mxu0 0.0
  %738 = vmatpush1.msra.mxu0 0.0
  %739 = vmatprep.subr.mxu0 0.0
  %740 = vmatpush1.msra.mxu0 0.0
  %741 = vmatprep.subr.mxu0 0.0
  %742 = vmatpush1.msra.mxu0 0.0
  %743 = vmatprep.subr.mxu0 0.0
  %744 = vmatpush1.msra.mxu0 0.0
  %745 = vmatprep.subr.mxu0 0.0
  %746 = vmatpush1.msra.mxu0 0.0
  %747 = vmatprep.subr.mxu0 0.0
  %748 = vmatpush1.msra.mxu0 0.0
  %749 = vmatprep.subr.mxu0 0.0
  %750 = vmatpush1.msra.mxu0 0.0
  %751 = vmatprep.subr.mxu0 0.0
  %752 = vmatpush1.msra.mxu0 0.0
  %753 = vmatprep.subr.mxu0 0.0
  %754 = vmatpush1.msra.mxu0 0.0
  %755 = vmatprep.mubr.f32.mxu0 0.0
  %756 = vmatmul.mubr.f32.gmra.mrb[0].mxu0 %v689
  %v757 = vpop.f32.mrb[0].mxu0
  %v758 = vadd.f32 0.0, %v757
  %v759 = vpop.f32.mrb[0].mxu0
  %760 = vdwg.mxu0
  %v761 = vlaneseq
  %v762 = vshrl.u32 %v761, 7
  %v763 = vsub.s32 0, %v762
  %v764 = vrot.slane %v685, %v763
  %v765 = vmul.f32 %v332, %v764
  %v766 = vmul.f32 %v333, %v764
  %v767 = vmul.f32 %v334, %v764
  %v768 = vmul.f32 %v335, %v764
  %v769 = vlaneseq
  %v770 = vshrl.u32 %v769, 7
  %v771 = vsub.s32 0, %v770
  %v772 = vrot.slane %v758, %v771
  %v773 = vadd.f32 %v765, %v772
  %v774 = vadd.f32 %v766, %v772
  %v775 = vadd.f32 %v767, %v772
  %v776 = vadd.f32 %v768, %v772
  %v777 = vmax.f32 %v773, 0.0
  %v778 = vmax.f32 %v774, 0.0
  %v779 = vmax.f32 %v775, 0.0
  %v780 = vmax.f32 %v776, 0.0
  %v783 = vrot.slane %v777, 7
  %v784 = vrot.slane %v778, 7
  %v785 = vsel %vm34, %v783, %v784
  %v788 = vsel %vm34, 0.0, %v783
  %v791 = vrot.slane %v779, 7
  %v792 = vrot.slane %v780, 7
  %v793 = vsel %vm34, %v791, %v792
  %v796 = vsel %vm34, 0.0, %v791
  %v797 = vpack.c.bf16 %v785, %v788
  %v798 = vpack.c.bf16 %v793, %v796
  %v799 = vld [vmem:[%s2] sm:$0xf]
  %v800 = vld [vmem:[%s2 + $0x4] sm:$0xf]
  %v801 = vld [vmem:[%s2 + $0x8] sm:$0xf]
  %v802 = vld [vmem:[%s2 + $0xc] sm:$0xf]
  %v803 = vld [vmem:[%s2 + $0x10] sm:$0xf]
  %v804 = vld [vmem:[%s2 + $0x14] sm:$0xf]
  %v805 = vld [vmem:[%s2 + $0x18] sm:$0xf]
  %v806 = vld [vmem:[%s2 + $0x1c] sm:$0xf]
  %v807 = vpack.c.bf16 %v778, %v777
  %v808 = vpack.c.bf16 %v780, %v779
  %s809 = scalar_lea.vmem %s2, 32
  %v810 = vld [vmem:[%s809] sm:$0xf]
  %v811 = vld [vmem:[%s809 + $0x4] sm:$0xf]
  %v812 = vld [vmem:[%s809 + $0x8] sm:$0xf]
  %v813 = vld [vmem:[%s809 + $0xc] sm:$0xf]
  %v814 = vld [vmem:[%s809 + $0x10] sm:$0xf]
  %v815 = vld [vmem:[%s809 + $0x14] sm:$0xf]
  %v816 = vld [vmem:[%s809 + $0x18] sm:$0xf]
  %v817 = vld [vmem:[%s809 + $0x1c] sm:$0xf]
  %v826 = vunpack.c.l.b16 %v810
  %v827 = vunpack.c.l.b16 %v811
  %v828 = vunpack.c.l.b16 %v812
  %v829 = vunpack.c.l.b16 %v813
  %v830 = vunpack.c.l.b16 %v814
  %v831 = vunpack.c.l.b16 %v815
  %v832 = vunpack.c.l.b16 %v816
  %v833 = vunpack.c.l.b16 %v817
  %v834 = vpack.c.b16 %v827, %v826
  %v835 = vpack.c.b16 %v829, %v828
  %v836 = vpack.c.b16 %v831, %v830
  %v837 = vpack.c.b16 %v833, %v832
  %v843 = vsel %vm94, %v807, 0
  %v846 = vsel %vm94, %v808, 0
  %848 = vmatprep.subr.bf16.mxu0 0
  %849 = vmatpush1.bf16.msra.mxu0 %v834
  %850 = vmatprep.subr.bf16.mxu0 0
  %851 = vmatpush1.bf16.msra.mxu0 %v835
  %852 = vmatprep.subr.bf16.mxu0 0
  %853 = vmatpush1.bf16.msra.mxu0 %v836
  %854 = vmatprep.subr.bf16.mxu0 0
  %855 = vmatpush1.bf16.msra.mxu0 %v837
  %856 = vmatprep.subr.bf16.mxu0 0
  %857 = vmatpush1.bf16.msra.mxu0 0
  %858 = vmatprep.subr.bf16.mxu0 0
  %859 = vmatpush1.bf16.msra.mxu0 0
  %860 = vmatprep.subr.bf16.mxu0 0
  %861 = vmatpush1.bf16.msra.mxu0 0
  %862 = vmatprep.subr.bf16.mxu0 0
  %863 = vmatpush1.bf16.msra.mxu0 0
  %864 = vmatprep.subr.bf16.mxu0 0
  %865 = vmatpush1.bf16.msra.mxu0 0
  %866 = vmatprep.subr.bf16.mxu0 0
  %867 = vmatpush1.bf16.msra.mxu0 0
  %868 = vmatprep.subr.bf16.mxu0 0
  %869 = vmatpush1.bf16.msra.mxu0 0
  %870 = vmatprep.subr.bf16.mxu0 0
  %871 = vmatpush1.bf16.msra.mxu0 0
  %872 = vmatprep.subr.bf16.mxu0 0
  %873 = vmatpush1.bf16.msra.mxu0 0
  %874 = vmatprep.subr.bf16.mxu0 0
  %875 = vmatpush1.bf16.msra.mxu0 0
  %876 = vmatprep.subr.bf16.mxu0 0
  %877 = vmatpush1.bf16.msra.mxu0 0
  %878 = vmatprep.subr.bf16.mxu0 0
  %879 = vmatpush1.bf16.msra.mxu0 0
  %880 = vmatprep.mubr.bf16.mxu0 0
  %881 = vmatmul.mubr.bf16.gmra.mrb[0].mxu0 %v843
  %v882 = vpop.f32.mrb[0].mxu0
  %v883 = vadd.f32 0.0, %v882
  %v884 = vpop.f32.mrb[0].mxu0
  %v885 = vpop.f32.mrb[0].mxu0
  %v886 = vadd.f32 0.0, %v885
  %v887 = vpop.f32.mrb[0].mxu0
  %888 = vmatprep.mubr.bf16.mxu0 0
  %889 = vmatmul.mubr.bf16.gmra.mrb[0].mxu0 %v846
  %v890 = vpop.f32.mrb[0].mxu0
  %v891 = vadd.f32 0.0, %v890
  %v892 = vpop.f32.mrb[0].mxu0
  %v893 = vpop.f32.mrb[0].mxu0
  %v894 = vadd.f32 0.0, %v893
  %v895 = vpop.f32.mrb[0].mxu0
  %896 = vdwg.mxu0
  %v905 = vunpack.c.l.b16 %v799
  %v906 = vunpack.c.l.b16 %v800
  %v907 = vunpack.c.l.b16 %v801
  %v908 = vunpack.c.l.b16 %v802
  %v909 = vunpack.c.l.b16 %v803
  %v910 = vunpack.c.l.b16 %v804
  %v911 = vunpack.c.l.b16 %v805
  %v912 = vunpack.c.l.b16 %v806
  %v913 = vpack.c.b16 %v906, %v905
  %v914 = vpack.c.b16 %v908, %v907
  %v915 = vpack.c.b16 %v910, %v909
  %v916 = vpack.c.b16 %v912, %v911
  %v922 = vsel %vm94, %v797, 0
  %v925 = vsel %vm94, %v798, 0
  %927 = vmatprep.subr.bf16.mxu0 0
  %928 = vmatpush1.bf16.msra.mxu0 %v913
  %929 = vmatprep.subr.bf16.mxu0 0
  %930 = vmatpush1.bf16.msra.mxu0 %v914
  %931 = vmatprep.subr.bf16.mxu0 0
  %932 = vmatpush1.bf16.msra.mxu0 %v915
  %933 = vmatprep.subr.bf16.mxu0 0
  %934 = vmatpush1.bf16.msra.mxu0 %v916
  %935 = vmatprep.subr.bf16.mxu0 0
  %936 = vmatpush1.bf16.msra.mxu0 0
  %937 = vmatprep.subr.bf16.mxu0 0
  %938 = vmatpush1.bf16.msra.mxu0 0
  %939 = vmatprep.subr.bf16.mxu0 0
  %940 = vmatpush1.bf16.msra.mxu0 0
  %941 = vmatprep.subr.bf16.mxu0 0
  %942 = vmatpush1.bf16.msra.mxu0 0
  %943 = vmatprep.subr.bf16.mxu0 0
  %944 = vmatpush1.bf16.msra.mxu0 0
  %945 = vmatprep.subr.bf16.mxu0 0
  %946 = vmatpush1.bf16.msra.mxu0 0
  %947 = vmatprep.subr.bf16.mxu0 0
  %948 = vmatpush1.bf16.msra.mxu0 0
  %949 = vmatprep.subr.bf16.mxu0 0
  %950 = vmatpush1.bf16.msra.mxu0 0
  %951 = vmatprep.subr.bf16.mxu0 0
  %952 = vmatpush1.bf16.msra.mxu0 0
  %953 = vmatprep.subr.bf16.mxu0 0
  %954 = vmatpush1.bf16.msra.mxu0 0
  %955 = vmatprep.subr.bf16.mxu0 0
  %956 = vmatpush1.bf16.msra.mxu0 0
  %957 = vmatprep.subr.bf16.mxu0 0
  %958 = vmatpush1.bf16.msra.mxu0 0
  %959 = vmatprep.mubr.bf16.mxu0 0
  %960 = vmatmul.mubr.bf16.gmra.mrb[0].mxu0 %v922
  %v961 = vpop.f32.mrb[0].mxu0
  %v962 = vadd.f32 %v883, %v961
  %v963 = vpop.f32.mrb[0].mxu0
  %v964 = vpop.f32.mrb[0].mxu0
  %v965 = vadd.f32 %v886, %v964
  %v966 = vpop.f32.mrb[0].mxu0
  %967 = vmatprep.mubr.bf16.mxu0 0
  %968 = vmatmul.mubr.bf16.gmra.mrb[0].mxu0 %v925
  %v969 = vpop.f32.mrb[0].mxu0
  %v970 = vadd.f32 %v891, %v969
  %v971 = vpop.f32.mrb[0].mxu0
  %v972 = vpop.f32.mrb[0].mxu0
  %v973 = vadd.f32 %v894, %v972
  %v974 = vpop.f32.mrb[0].mxu0
  %975 = vdwg.mxu0
  %v976 = vrot.slane %v777, 1
  %v977 = vrot.slane %v778, 1
  %v978 = vsel %vm229, %v976, %v977
  %v981 = vsel %vm229, %v977, 0.0
  %v982 = vrot.slane %v779, 1
  %v983 = vrot.slane %v780, 1
  %v984 = vsel %vm229, %v982, %v983
  %v987 = vsel %vm229, %v983, 0.0
  %v988 = vpack.c.bf16 %v981, %v978
  %v989 = vpack.c.bf16 %v987, %v984
  %s990 = scalar_lea.vmem %s2, 64
  %v991 = vld [vmem:[%s990] sm:$0xf]
  %v992 = vld [vmem:[%s990 + $0x4] sm:$0xf]
  %v993 = vld [vmem:[%s990 + $0x8] sm:$0xf]
  %v994 = vld [vmem:[%s990 + $0xc] sm:$0xf]
  %v995 = vld [vmem:[%s990 + $0x10] sm:$0xf]
  %v996 = vld [vmem:[%s990 + $0x14] sm:$0xf]
  %v997 = vld [vmem:[%s990 + $0x18] sm:$0xf]
  %v998 = vld [vmem:[%s990 + $0x1c] sm:$0xf]
  %v1007 = vunpack.c.l.b16 %v991
  %v1008 = vunpack.c.l.b16 %v992
  %v1009 = vunpack.c.l.b16 %v993
  %v1010 = vunpack.c.l.b16 %v994
  %v1011 = vunpack.c.l.b16 %v995
  %v1012 = vunpack.c.l.b16 %v996
  %v1013 = vunpack.c.l.b16 %v997
  %v1014 = vunpack.c.l.b16 %v998
  %v1015 = vpack.c.b16 %v1008, %v1007
  %v1016 = vpack.c.b16 %v1010, %v1009
  %v1017 = vpack.c.b16 %v1012, %v1011
  %v1018 = vpack.c.b16 %v1014, %v1013
  %v1024 = vsel %vm94, %v988, 0
  %v1027 = vsel %vm94, %v989, 0
  %1029 = vmatprep.subr.bf16.mxu0 0
  %1030 = vmatpush1.bf16.msra.mxu0 %v1015
  %1031 = vmatprep.subr.bf16.mxu0 0
  %1032 = vmatpush1.bf16.msra.mxu0 %v1016
  %1033 = vmatprep.subr.bf16.mxu0 0
  %1034 = vmatpush1.bf16.msra.mxu0 %v1017
  %1035 = vmatprep.subr.bf16.mxu0 0
  %1036 = vmatpush1.bf16.msra.mxu0 %v1018
  %1037 = vmatprep.subr.bf16.mxu0 0
  %1038 = vmatpush1.bf16.msra.mxu0 0
  %1039 = vmatprep.subr.bf16.mxu0 0
  %1040 = vmatpush1.bf16.msra.mxu0 0
  %1041 = vmatprep.subr.bf16.mxu0 0
  %1042 = vmatpush1.bf16.msra.mxu0 0
  %1043 = vmatprep.subr.bf16.mxu0 0
  %1044 = vmatpush1.bf16.msra.mxu0 0
  %1045 = vmatprep.subr.bf16.mxu0 0
  %1046 = vmatpush1.bf16.msra.mxu0 0
  %1047 = vmatprep.subr.bf16.mxu0 0
  %1048 = vmatpush1.bf16.msra.mxu0 0
  %1049 = vmatprep.subr.bf16.mxu0 0
  %1050 = vmatpush1.bf16.msra.mxu0 0
  %1051 = vmatprep.subr.bf16.mxu0 0
  %1052 = vmatpush1.bf16.msra.mxu0 0
  %1053 = vmatprep.subr.bf16.mxu0 0
  %1054 = vmatpush1.bf16.msra.mxu0 0
  %1055 = vmatprep.subr.bf16.mxu0 0
  %1056 = vmatpush1.bf16.msra.mxu0 0
  %1057 = vmatprep.subr.bf16.mxu0 0
  %1058 = vmatpush1.bf16.msra.mxu0 0
  %1059 = vmatprep.subr.bf16.mxu0 0
  %1060 = vmatpush1.bf16.msra.mxu0 0
  %1061 = vmatprep.mubr.bf16.mxu0 0
  %1062 = vmatmul.mubr.bf16.gmra.mrb[0].mxu0 %v1024
  %v1063 = vpop.f32.mrb[0].mxu0
  %v1064 = vadd.f32 0.0, %v1063
  %v1065 = vpop.f32.mrb[0].mxu0
  %v1066 = vpop.f32.mrb[0].mxu0
  %v1067 = vadd.f32 0.0, %v1066
  %v1068 = vpop.f32.mrb[0].mxu0
  %1069 = vmatprep.mubr.bf16.mxu0 0
  %1070 = vmatmul.mubr.bf16.gmra.mrb[0].mxu0 %v1027
  %v1071 = vpop.f32.mrb[0].mxu0
  %v1072 = vadd.f32 0.0, %v1071
  %v1073 = vpop.f32.mrb[0].mxu0
  %v1074 = vpop.f32.mrb[0].mxu0
  %v1075 = vadd.f32 0.0, %v1074
  %v1076 = vpop.f32.mrb[0].mxu0
  %1077 = vdwg.mxu0
  %v1078 = vadd.f32 %v962, %v1064
  %v1079 = vadd.f32 %v965, %v1067
  %v1080 = vadd.f32 %v970, %v1072
  %v1081 = vadd.f32 %v973, %v1075
  %v1082 = vsel %vm94, %v1078, 0.0
  %v1083 = vsel %vm94, %v1079, 0.0
  %v1084 = vadd.f32 %v1082, %v1083
  %v1085 = vsel %vm94, %v1080, 0.0
  %v1086 = vadd.f32 %v1084, %v1085
  %v1087 = vsel %vm94, %v1081, 0.0
  %v1088 = vadd.f32 %v1086, %v1087
  %v1089 = vrot.slane %v1088, 4
  %v1090 = vadd.f32 %v1088, %v1089
  %v1091 = vrot.slane %v1090, 2
  %v1092 = vadd.f32 %v1090, %v1091
  %v1093 = vrot.slane %v1092, 1
  %v1094 = vadd.f32 %v1092, %v1093
  %v1096 = vsel %vm94, %v1094, 0
  %1098 = vmatprep.subr.mxu0 0.0
  %1099 = vmatpush1.msra.mxu0 %v336
  %1100 = vmatprep.subr.mxu0 0.0
  %1101 = vmatpush1.msra.mxu0 %v337
  %1102 = vmatprep.subr.mxu0 0.0
  %1103 = vmatpush1.msra.mxu0 %v338
  %1104 = vmatprep.subr.mxu0 0.0
  %1105 = vmatpush1.msra.mxu0 %v339
  %1106 = vmatprep.subr.mxu0 0.0
  %1107 = vmatpush1.msra.mxu0 %v340
  %1108 = vmatprep.subr.mxu0 0.0
  %1109 = vmatpush1.msra.mxu0 %v341
  %1110 = vmatprep.subr.mxu0 0.0
  %1111 = vmatpush1.msra.mxu0 %v342
  %1112 = vmatprep.subr.mxu0 0.0
  %1113 = vmatpush1.msra.mxu0 %v343
  %1114 = vmatprep.subr.mxu0 0.0
  %1115 = vmatpush1.msra.mxu0 0.0
  %1116 = vmatprep.subr.mxu0 0.0
  %1117 = vmatpush1.msra.mxu0 0.0
  %1118 = vmatprep.subr.mxu0 0.0
  %1119 = vmatpush1.msra.mxu0 0.0
  %1120 = vmatprep.subr.mxu0 0.0
  %1121 = vmatpush1.msra.mxu0 0.0
  %1122 = vmatprep.subr.mxu0 0.0
  %1123 = vmatpush1.msra.mxu0 0.0
  %1124 = vmatprep.subr.mxu0 0.0
  %1125 = vmatpush1.msra.mxu0 0.0
  %1126 = vmatprep.subr.mxu0 0.0
  %1127 = vmatpush1.msra.mxu0 0.0
  %1128 = vmatprep.subr.mxu0 0.0
  %1129 = vmatpush1.msra.mxu0 0.0
  %1130 = vmatprep.subr.mxu0 0.0
  %1131 = vmatpush1.msra.mxu0 0.0
  %1132 = vmatprep.subr.mxu0 0.0
  %1133 = vmatpush1.msra.mxu0 0.0
  %1134 = vmatprep.subr.mxu0 0.0
  %1135 = vmatpush1.msra.mxu0 0.0
  %1136 = vmatprep.subr.mxu0 0.0
  %1137 = vmatpush1.msra.mxu0 0.0
  %1138 = vmatprep.subr.mxu0 0.0
  %1139 = vmatpush1.msra.mxu0 0.0
  %1140 = vmatprep.subr.mxu0 0.0
  %1141 = vmatpush1.msra.mxu0 0.0
  %1142 = vmatprep.subr.mxu0 0.0
  %1143 = vmatpush1.msra.mxu0 0.0
  %1144 = vmatprep.subr.mxu0 0.0
  %1145 = vmatpush1.msra.mxu0 0.0
  %1146 = vmatprep.subr.mxu0 0.0
  %1147 = vmatpush1.msra.mxu0 0.0
  %1148 = vmatprep.subr.mxu0 0.0
  %1149 = vmatpush1.msra.mxu0 0.0
  %1150 = vmatprep.subr.mxu0 0.0
  %1151 = vmatpush1.msra.mxu0 0.0
  %1152 = vmatprep.subr.mxu0 0.0
  %1153 = vmatpush1.msra.mxu0 0.0
  %1154 = vmatprep.subr.mxu0 0.0
  %1155 = vmatpush1.msra.mxu0 0.0
  %1156 = vmatprep.subr.mxu0 0.0
  %1157 = vmatpush1.msra.mxu0 0.0
  %1158 = vmatprep.subr.mxu0 0.0
  %1159 = vmatpush1.msra.mxu0 0.0
  %1160 = vmatprep.subr.mxu0 0.0
  %1161 = vmatpush1.msra.mxu0 0.0
  %1162 = vmatprep.mubr.f32.mxu0 0.0
  %1163 = vmatmul.mubr.f32.gmra.mrb[0].mxu0 %v1096
  %v1164 = vpop.f32.mrb[0].mxu0
  %v1165 = vadd.f32 0.0, %v1164
  %v1166 = vpop.f32.mrb[0].mxu0
  %1167 = vdwg.mxu0
  %v1168 = vmul.f32 %v1165, %v431
  %v1170 = vsel %vm433, %v1168, 0
  %1172 = vmatprep.subr.mxu0 0.0
  %1173 = vmatpush1.msra.mxu0 %v439
  %1174 = vmatprep.subr.mxu0 0.0
  %1175 = vmatpush1.msra.mxu0 0.0
  %1176 = vmatprep.subr.mxu0 0.0
  %1177 = vmatpush1.msra.mxu0 0.0
  %1178 = vmatprep.subr.mxu0 0.0
  %1179 = vmatpush1.msra.mxu0 0.0
  %1180 = vmatprep.subr.mxu0 0.0
  %1181 = vmatpush1.msra.mxu0 0.0
  %1182 = vmatprep.subr.mxu0 0.0
  %1183 = vmatpush1.msra.mxu0 0.0
  %1184 = vmatprep.subr.mxu0 0.0
  %1185 = vmatpush1.msra.mxu0 0.0
  %1186 = vmatprep.subr.mxu0 0.0
  %1187 = vmatpush1.msra.mxu0 0.0
  %1188 = vmatprep.subr.mxu0 0.0
  %1189 = vmatpush1.msra.mxu0 0.0
  %1190 = vmatprep.subr.mxu0 0.0
  %1191 = vmatpush1.msra.mxu0 0.0
  %1192 = vmatprep.subr.mxu0 0.0
  %1193 = vmatpush1.msra.mxu0 0.0
  %1194 = vmatprep.subr.mxu0 0.0
  %1195 = vmatpush1.msra.mxu0 0.0
  %1196 = vmatprep.subr.mxu0 0.0
  %1197 = vmatpush1.msra.mxu0 0.0
  %1198 = vmatprep.subr.mxu0 0.0
  %1199 = vmatpush1.msra.mxu0 0.0
  %1200 = vmatprep.subr.mxu0 0.0
  %1201 = vmatpush1.msra.mxu0 0.0
  %1202 = vmatprep.subr.mxu0 0.0
  %1203 = vmatpush1.msra.mxu0 0.0
  %1204 = vmatprep.subr.mxu0 0.0
  %1205 = vmatpush1.msra.mxu0 0.0
  %1206 = vmatprep.subr.mxu0 0.0
  %1207 = vmatpush1.msra.mxu0 0.0
  %1208 = vmatprep.subr.mxu0 0.0
  %1209 = vmatpush1.msra.mxu0 0.0
  %1210 = vmatprep.subr.mxu0 0.0
  %1211 = vmatpush1.msra.mxu0 0.0
  %1212 = vmatprep.subr.mxu0 0.0
  %1213 = vmatpush1.msra.mxu0 0.0
  %1214 = vmatprep.subr.mxu0 0.0
  %1215 = vmatpush1.msra.mxu0 0.0
  %1216 = vmatprep.subr.mxu0 0.0
  %1217 = vmatpush1.msra.mxu0 0.0
  %1218 = vmatprep.subr.mxu0 0.0
  %1219 = vmatpush1.msra.mxu0 0.0
  %1220 = vmatprep.subr.mxu0 0.0
  %1221 = vmatpush1.msra.mxu0 0.0
  %1222 = vmatprep.subr.mxu0 0.0
  %1223 = vmatpush1.msra.mxu0 0.0
  %1224 = vmatprep.subr.mxu0 0.0
  %1225 = vmatpush1.msra.mxu0 0.0
  %1226 = vmatprep.subr.mxu0 0.0
  %1227 = vmatpush1.msra.mxu0 0.0
  %1228 = vmatprep.subr.mxu0 0.0
  %1229 = vmatpush1.msra.mxu0 0.0
  %1230 = vmatprep.subr.mxu0 0.0
  %1231 = vmatpush1.msra.mxu0 0.0
  %1232 = vmatprep.subr.mxu0 0.0
  %1233 = vmatpush1.msra.mxu0 0.0
  %1234 = vmatprep.subr.mxu0 0.0
  %1235 = vmatpush1.msra.mxu0 0.0
  %1236 = vmatprep.mubr.f32.mxu0 0.0
  %1237 = vmatmul.mubr.f32.gmra.mrb[0].mxu0 %v1170
  %v1238 = vpop.f32.mrb[0].mxu0
  %v1239 = vadd.f32 0.0, %v1238
  %v1240 = vpop.f32.mrb[0].mxu0
  %1241 = vdwg.mxu0
  %v1242 = vlaneseq
  %v1243 = vshrl.u32 %v1242, 7
  %v1244 = vsub.s32 0, %v1243
  %v1245 = vrot.slane %v1239, %v1244
  %v1246 = vsub.f32 %v1078, %v1245
  %v1247 = vsub.f32 %v1079, %v1245
  %v1248 = vsub.f32 %v1080, %v1245
  %v1249 = vsub.f32 %v1081, %v1245
  %v1250 = vmul.f32 %v1246, %v1246
  %v1251 = vmul.f32 %v1247, %v1247
  %v1252 = vmul.f32 %v1248, %v1248
  %v1253 = vmul.f32 %v1249, %v1249
  %v1254 = vsel %vm94, %v1250, 0.0
  %v1255 = vsel %vm94, %v1251, 0.0
  %v1256 = vadd.f32 %v1254, %v1255
  %v1257 = vsel %vm94, %v1252, 0.0
  %v1258 = vadd.f32 %v1256, %v1257
  %v1259 = vsel %vm94, %v1253, 0.0
  %v1260 = vadd.f32 %v1258, %v1259
  %v1261 = vrot.slane %v1260, 4
  %v1262 = vadd.f32 %v1260, %v1261
  %v1263 = vrot.slane %v1262, 2
  %v1264 = vadd.f32 %v1262, %v1263
  %v1265 = vrot.slane %v1264, 1
  %v1266 = vadd.f32 %v1264, %v1265
  %v1268 = vsel %vm94, %v1266, 0
  %1270 = vmatprep.subr.mxu0 0.0
  %1271 = vmatpush1.msra.mxu0 %v336
  %1272 = vmatprep.subr.mxu0 0.0
  %1273 = vmatpush1.msra.mxu0 %v337
  %1274 = vmatprep.subr.mxu0 0.0
  %1275 = vmatpush1.msra.mxu0 %v338
  %1276 = vmatprep.subr.mxu0 0.0
  %1277 = vmatpush1.msra.mxu0 %v339
  %1278 = vmatprep.subr.mxu0 0.0
  %1279 = vmatpush1.msra.mxu0 %v340
  %1280 = vmatprep.subr.mxu0 0.0
  %1281 = vmatpush1.msra.mxu0 %v341
  %1282 = vmatprep.subr.mxu0 0.0
  %1283 = vmatpush1.msra.mxu0 %v342
  %1284 = vmatprep.subr.mxu0 0.0
  %1285 = vmatpush1.msra.mxu0 %v343
  %1286 = vmatprep.subr.mxu0 0.0
  %1287 = vmatpush1.msra.mxu0 0.0
  %1288 = vmatprep.subr.mxu0 0.0
  %1289 = vmatpush1.msra.mxu0 0.0
  %1290 = vmatprep.subr.mxu0 0.0
  %1291 = vmatpush1.msra.mxu0 0.0
  %1292 = vmatprep.subr.mxu0 0.0
  %1293 = vmatpush1.msra.mxu0 0.0
  %1294 = vmatprep.subr.mxu0 0.0
  %1295 = vmatpush1.msra.mxu0 0.0
  %1296 = vmatprep.subr.mxu0 0.0
  %1297 = vmatpush1.msra.mxu0 0.0
  %1298 = vmatprep.subr.mxu0 0.0
  %1299 = vmatpush1.msra.mxu0 0.0
  %1300 = vmatprep.subr.mxu0 0.0
  %1301 = vmatpush1.msra.mxu0 0.0
  %1302 = vmatprep.subr.mxu0 0.0
  %1303 = vmatpush1.msra.mxu0 0.0
  %1304 = vmatprep.subr.mxu0 0.0
  %1305 = vmatpush1.msra.mxu0 0.0
  %1306 = vmatprep.subr.mxu0 0.0
  %1307 = vmatpush1.msra.mxu0 0.0
  %1308 = vmatprep.subr.mxu0 0.0
  %1309 = vmatpush1.msra.mxu0 0.0
  %1310 = vmatprep.subr.mxu0 0.0
  %1311 = vmatpush1.msra.mxu0 0.0
  %1312 = vmatprep.subr.mxu0 0.0
  %1313 = vmatpush1.msra.mxu0 0.0
  %1314 = vmatprep.subr.mxu0 0.0
  %1315 = vmatpush1.msra.mxu0 0.0
  %1316 = vmatprep.subr.mxu0 0.0
  %1317 = vmatpush1.msra.mxu0 0.0
  %1318 = vmatprep.subr.mxu0 0.0
  %1319 = vmatpush1.msra.mxu0 0.0
  %1320 = vmatprep.subr.mxu0 0.0
  %1321 = vmatpush1.msra.mxu0 0.0
  %1322 = vmatprep.subr.mxu0 0.0
  %1323 = vmatpush1.msra.mxu0 0.0
  %1324 = vmatprep.subr.mxu0 0.0
  %1325 = vmatpush1.msra.mxu0 0.0
  %1326 = vmatprep.subr.mxu0 0.0
  %1327 = vmatpush1.msra.mxu0 0.0
  %1328 = vmatprep.subr.mxu0 0.0
  %1329 = vmatpush1.msra.mxu0 0.0
  %1330 = vmatprep.subr.mxu0 0.0
  %1331 = vmatpush1.msra.mxu0 0.0
  %1332 = vmatprep.subr.mxu0 0.0
  %1333 = vmatpush1.msra.mxu0 0.0
  %1334 = vmatprep.mubr.f32.mxu0 0.0
  %1335 = vmatmul.mubr.f32.gmra.mrb[0].mxu0 %v1268
  %v1336 = vpop.f32.mrb[0].mxu0
  %v1337 = vadd.f32 0.0, %v1336
  %v1338 = vpop.f32.mrb[0].mxu0
  %1339 = vdwg.mxu0
  %v1340 = vmul.f32 %v1337, %v431
  %v1341 = vadd.f32 %v1340, 1e-05
  %v1342 = vrsqrt.pop %v1341
  %v1343 = vmul.f32 %v30, %v1342
  %v1344 = vmul.f32 %v1168, %v1343
  %v1345 = vsub.f32 %v31, %v1344
  %v1347 = vsel %vm433, %v1343, 0
  %1349 = vmatprep.subr.mxu0 0.0
  %1350 = vmatpush1.msra.mxu0 %v439
  %1351 = vmatprep.subr.mxu0 0.0
  %1352 = vmatpush1.msra.mxu0 0.0
  %1353 = vmatprep.subr.mxu0 0.0
  %1354 = vmatpush1.msra.mxu0 0.0
  %1355 = vmatprep.subr.mxu0 0.0
  %1356 = vmatpush1.msra.mxu0 0.0
  %1357 = vmatprep.subr.mxu0 0.0
  %1358 = vmatpush1.msra.mxu0 0.0
  %1359 = vmatprep.subr.mxu0 0.0
  %1360 = vmatpush1.msra.mxu0 0.0
  %1361 = vmatprep.subr.mxu0 0.0
  %1362 = vmatpush1.msra.mxu0 0.0
  %1363 = vmatprep.subr.mxu0 0.0
  %1364 = vmatpush1.msra.mxu0 0.0
  %1365 = vmatprep.subr.mxu0 0.0
  %1366 = vmatpush1.msra.mxu0 0.0
  %1367 = vmatprep.subr.mxu0 0.0
  %1368 = vmatpush1.msra.mxu0 0.0
  %1369 = vmatprep.subr.mxu0 0.0
  %1370 = vmatpush1.msra.mxu0 0.0
  %1371 = vmatprep.subr.mxu0 0.0
  %1372 = vmatpush1.msra.mxu0 0.0
  %1373 = vmatprep.subr.mxu0 0.0
  %1374 = vmatpush1.msra.mxu0 0.0
  %1375 = vmatprep.subr.mxu0 0.0
  %1376 = vmatpush1.msra.mxu0 0.0
  %1377 = vmatprep.subr.mxu0 0.0
  %1378 = vmatpush1.msra.mxu0 0.0
  %1379 = vmatprep.subr.mxu0 0.0
  %1380 = vmatpush1.msra.mxu0 0.0
  %1381 = vmatprep.subr.mxu0 0.0
  %1382 = vmatpush1.msra.mxu0 0.0
  %1383 = vmatprep.subr.mxu0 0.0
  %1384 = vmatpush1.msra.mxu0 0.0
  %1385 = vmatprep.subr.mxu0 0.0
  %1386 = vmatpush1.msra.mxu0 0.0
  %1387 = vmatprep.subr.mxu0 0.0
  %1388 = vmatpush1.msra.mxu0 0.0
  %1389 = vmatprep.subr.mxu0 0.0
  %1390 = vmatpush1.msra.mxu0 0.0
  %1391 = vmatprep.subr.mxu0 0.0
  %1392 = vmatpush1.msra.mxu0 0.0
  %1393 = vmatprep.subr.mxu0 0.0
  %1394 = vmatpush1.msra.mxu0 0.0
  %1395 = vmatprep.subr.mxu0 0.0
  %1396 = vmatpush1.msra.mxu0 0.0
  %1397 = vmatprep.subr.mxu0 0.0
  %1398 = vmatpush1.msra.mxu0 0.0
  %1399 = vmatprep.subr.mxu0 0.0
  %1400 = vmatpush1.msra.mxu0 0.0
  %1401 = vmatprep.subr.mxu0 0.0
  %1402 = vmatpush1.msra.mxu0 0.0
  %1403 = vmatprep.subr.mxu0 0.0
  %1404 = vmatpush1.msra.mxu0 0.0
  %1405 = vmatprep.subr.mxu0 0.0
  %1406 = vmatpush1.msra.mxu0 0.0
  %1407 = vmatprep.subr.mxu0 0.0
  %1408 = vmatpush1.msra.mxu0 0.0
  %1409 = vmatprep.subr.mxu0 0.0
  %1410 = vmatpush1.msra.mxu0 0.0
  %1411 = vmatprep.subr.mxu0 0.0
  %1412 = vmatpush1.msra.mxu0 0.0
  %1413 = vmatprep.mubr.f32.mxu0 0.0
  %1414 = vmatmul.mubr.f32.gmra.mrb[0].mxu0 %v1347
  %v1415 = vpop.f32.mrb[0].mxu0
  %v1416 = vadd.f32 0.0, %v1415
  %v1417 = vpop.f32.mrb[0].mxu0
  %1418 = vdwg.mxu0
  %v1420 = vsel %vm433, %v1345, 0
  %1422 = vmatprep.subr.mxu0 0.0
  %1423 = vmatpush1.msra.mxu0 %v439
  %1424 = vmatprep.subr.mxu0 0.0
  %1425 = vmatpush1.msra.mxu0 0.0
  %1426 = vmatprep.subr.mxu0 0.0
  %1427 = vmatpush1.msra.mxu0 0.0
  %1428 = vmatprep.subr.mxu0 0.0
  %1429 = vmatpush1.msra.mxu0 0.0
  %1430 = vmatprep.subr.mxu0 0.0
  %1431 = vmatpush1.msra.mxu0 0.0
  %1432 = vmatprep.subr.mxu0 0.0
  %1433 = vmatpush1.msra.mxu0 0.0
  %1434 = vmatprep.subr.mxu0 0.0
  %1435 = vmatpush1.msra.mxu0 0.0
  %1436 = vmatprep.subr.mxu0 0.0
  %1437 = vmatpush1.msra.mxu0 0.0
  %1438 = vmatprep.subr.mxu0 0.0
  %1439 = vmatpush1.msra.mxu0 0.0
  %1440 = vmatprep.subr.mxu0 0.0
  %1441 = vmatpush1.msra.mxu0 0.0
  %1442 = vmatprep.subr.mxu0 0.0
  %1443 = vmatpush1.msra.mxu0 0.0
  %1444 = vmatprep.subr.mxu0 0.0
  %1445 = vmatpush1.msra.mxu0 0.0
  %1446 = vmatprep.subr.mxu0 0.0
  %1447 = vmatpush1.msra.mxu0 0.0
  %1448 = vmatprep.subr.mxu0 0.0
  %1449 = vmatpush1.msra.mxu0 0.0
  %1450 = vmatprep.subr.mxu0 0.0
  %1451 = vmatpush1.msra.mxu0 0.0
  %1452 = vmatprep.subr.mxu0 0.0
  %1453 = vmatpush1.msra.mxu0 0.0
  %1454 = vmatprep.subr.mxu0 0.0
  %1455 = vmatpush1.msra.mxu0 0.0
  %1456 = vmatprep.subr.mxu0 0.0
  %1457 = vmatpush1.msra.mxu0 0.0
  %1458 = vmatprep.subr.mxu0 0.0
  %1459 = vmatpush1.msra.mxu0 0.0
  %1460 = vmatprep.subr.mxu0 0.0
  %1461 = vmatpush1.msra.mxu0 0.0
  %1462 = vmatprep.subr.mxu0 0.0
  %1463 = vmatpush1.msra.mxu0 0.0
  %1464 = vmatprep.subr.mxu0 0.0
  %1465 = vmatpush1.msra.mxu0 0.0
  %1466 = vmatprep.subr.mxu0 0.0
  %1467 = vmatpush1.msra.mxu0 0.0
  %1468 = vmatprep.subr.mxu0 0.0
  %1469 = vmatpush1.msra.mxu0 0.0
  %1470 = vmatprep.subr.mxu0 0.0
  %1471 = vmatpush1.msra.mxu0 0.0
  %1472 = vmatprep.subr.mxu0 0.0
  %1473 = vmatpush1.msra.mxu0 0.0
  %1474 = vmatprep.subr.mxu0 0.0
  %1475 = vmatpush1.msra.mxu0 0.0
  %1476 = vmatprep.subr.mxu0 0.0
  %1477 = vmatpush1.msra.mxu0 0.0
  %1478 = vmatprep.subr.mxu0 0.0
  %1479 = vmatpush1.msra.mxu0 0.0
  %1480 = vmatprep.subr.mxu0 0.0
  %1481 = vmatpush1.msra.mxu0 0.0
  %1482 = vmatprep.subr.mxu0 0.0
  %1483 = vmatpush1.msra.mxu0 0.0
  %1484 = vmatprep.subr.mxu0 0.0
  %1485 = vmatpush1.msra.mxu0 0.0
  %1486 = vmatprep.mubr.f32.mxu0 0.0
  %1487 = vmatmul.mubr.f32.gmra.mrb[0].mxu0 %v1420
  %v1488 = vpop.f32.mrb[0].mxu0
  %v1489 = vadd.f32 0.0, %v1488
  %v1490 = vpop.f32.mrb[0].mxu0
  %1491 = vdwg.mxu0
  %v1492 = vlaneseq
  %v1493 = vshrl.u32 %v1492, 7
  %v1494 = vsub.s32 0, %v1493
  %v1495 = vrot.slane %v1416, %v1494
  %v1496 = vmul.f32 %v1078, %v1495
  %v1497 = vmul.f32 %v1079, %v1495
  %v1498 = vmul.f32 %v1080, %v1495
  %v1499 = vmul.f32 %v1081, %v1495
  %v1500 = vlaneseq
  %v1501 = vshrl.u32 %v1500, 7
  %v1502 = vsub.s32 0, %v1501
  %v1503 = vrot.slane %v1489, %v1502
  %v1504 = vadd.f32 %v1496, %v1503
  %v1505 = vadd.f32 %v1497, %v1503
  %v1506 = vadd.f32 %v1498, %v1503
  %v1507 = vadd.f32 %v1499, %v1503
  %v1508 = vadd.f32 %v1504, %v24
  %v1509 = vadd.f32 %v1505, %v25
  %v1510 = vadd.f32 %v1506, %v26
  %v1511 = vadd.f32 %v1507, %v27
  %1512 = vst.msk [vmem:[%s6] sm:$0xff] %vm94, %v1508
  %1513 = vst.msk [vmem:[%s6 + $0x8] sm:$0xff] %vm94, %v1509
  %1514 = vst.msk [vmem:[%s6 + $0x10] sm:$0xff] %vm94, %v1510
  %1515 = vst.msk [vmem:[%s6 + $0x18] sm:$0xff] %vm94, %v1511
  // Predicated region
  $region26: #{resblock_forward.1} parent=0 // pred_check
    _
  $region27: #{resblock_forward.1} parent=0 // pred_check_branch
    %1517 = sbr.rel (0) target = $region29
  $region28: #{resblock_forward.1} parent=0 // pred_region
    _
  $region29: #{resblock_forward.1} parent=0 // pred_fallthru
    _
  // Predicated region
  $region30: #{resblock_forward.1} parent=0 // pred_check
    _
  $region31: #{resblock_forward.1} parent=0 // pred_check_branch
    %1519 = sbr.rel (0) target = $region33
  $region32: #{resblock_forward.1} parent=0 // pred_region
    _
  $region33: #{resblock_forward.1} parent=0 // pred_fallthru
    _

</llo_original>
